<compile_context>
chip_gen: v5e
topology: v5e:2x2
jax: 0.10.0
libtpu: 0.0.40
codegen_flags: <defaults>
</compile_context>

<pallas_src>
import functools

import numpy as np
import jax
import jax.numpy as jnp
from jax import lax
from jax.experimental import pallas as pl
from jax.experimental.pallas import tpu as pltpu

VERY_SMALL_NUMBER = 1e-31
NEG_BIG = -1e30


def _round_up(x, m):
    return (x + m - 1) // m * m


def _sigmoid(x):
    # Numerically safe logistic: exp() only of non-positive arguments, no overflow/NaN.
    e = jnp.exp(-jnp.abs(x))
    return jnp.where(x >= 0, 1.0 / (1.0 + e), e / (1.0 + e))


def _softmax_rows(x):
    m = jnp.max(x, axis=-1, keepdims=True)
    e = jnp.exp(x - m)
    return e * pl.reciprocal(jnp.sum(e, axis=-1, keepdims=True), approx=True)


def _mxu(a, w):
    # bf16 operands on the MXU, f32 accumulation.
    return jnp.dot(a.astype(w.dtype), w, preferred_element_type=jnp.float32)


def _tree_sum(terms):
    # pairwise accumulation (avoids one long serial add chain)
    while len(terms) > 1:
        nxt = [terms[i] + terms[i + 1] for i in range(0, len(terms) - 1, 2)]
        if len(terms) % 2:
            nxt.append(terms[-1])
        terms = nxt
    return terms[0]


# --------------------------------------------------------------------------------------
# Kernel A: LSTM step + attentions + pointer gate (once) and tiled vocab logits + LSE.
# --------------------------------------------------------------------------------------
def _state_logits_kernel(
    embedded_ref, h0_ref, c0_ref,
    enc_mem_ref, enc_memW2_ref, dec_mem_ref, dec_memW2_ref, cov_ref,
    fc_w_ref, fc_b_ref, w_ih_ref, w_hh_ref, b_gates_ref,
    attn_wh_ref, attn_wc_ref, enc_w3_ref, dec_w3_ref, cover_w_ref,
    ptr_we_ref, ptr_wH_ref, ptr_b_ref,
    out_w_ref,
    logits_ref, pack_ref,
    combined_s, m_s, l_s,
    *, vocab_size, tile_v, H, S):
    j = pl.program_id(0)

    @pl.when(j == 0)
    def _():
        embedded = embedded_ref[...]
        h0 = h0_ref[...]
        c0 = c0_ref[...]

        # fc_dec_input with prev_enc_context == 0 -> its zero weight block is dropped.
        dec_in = _mxu(embedded, fc_w_ref[...]) + fc_b_ref[...]

        # Single-step LSTM (PyTorch gate order i, f, g, o); biases pre-summed.
        gates = _mxu(dec_in, w_ih_ref[...]) + _mxu(h0, w_hh_ref[...]) + b_gates_ref[...]
        i_g = _sigmoid(gates[:, 0 * H:1 * H])
        f_g = _sigmoid(gates[:, 1 * H:2 * H])
        g_g = jnp.tanh(gates[:, 2 * H:3 * H])
        o_g = _sigmoid(gates[:, 3 * H:4 * H])
        c_new = f_g * c0 + i_g * g_g
        h_new = o_g * jnp.tanh(c_new)

        # Fused attention query projections: one (B,H)@(H,2H) matmul per LSTM state.
        q_all = _mxu(h_new, attn_wh_ref[...]) + _mxu(c_new, attn_wc_ref[...])
        q_enc = q_all[:, :H]
        q_dec = q_all[:, H:]

        # Encoder 'add' attention with coverage (input_mask is None in this config).
        add = cov_ref[...][:, :, None] * cover_w_ref[...][None, :, :]
        e_enc = jnp.tanh(enc_memW2_ref[...] + q_enc[:, None, :] + add)
        enc_energy = jnp.sum(e_enc * enc_w3_ref[...][None, :, :], axis=-1)      # (B,S)
        enc_attn = _softmax_rows(enc_energy)
        enc_ctx = jnp.sum(enc_attn[:, :, None] * enc_mem_ref[...], axis=1)      # (B,H)

        # Decoder 'add' attention (no mask, no coverage).
        e_dec = jnp.tanh(dec_memW2_ref[...] + q_dec[:, None, :])
        dec_energy = jnp.sum(e_dec * dec_w3_ref[...][None, :, :], axis=-1)      # (B,T)
        dec_attn = _softmax_rows(dec_energy)
        dec_ctx = jnp.sum(dec_attn[:, :, None] * dec_mem_ref[...], axis=1)      # (B,H)

        # Pointer gate on the VPU: multiplies + one lane reduction (no N=1 MXU matmuls).
        # TODO(synk): original PyTorch appends dec_context with shape (B,H,1) to this cat,
        # which would error; implementing the intended (squeezed) semantics here.
        wH = ptr_wH_ref[...]                                                    # (4,H)
        ptr_vec = (h_new * wH[0:1, :] + c_new * wH[1:2, :]
                   + enc_ctx * wH[2:3, :] + dec_ctx * wH[3:4, :])
        ptr_logit = (jnp.sum(embedded * ptr_we_ref[...], axis=-1, keepdims=True)
                     + jnp.sum(ptr_vec, axis=-1, keepdims=True) + ptr_b_ref[...])
        prob_ptr = _sigmoid(ptr_logit)                                          # (B,1)

        # Keep the combined vector resident (bf16) for all vocab tiles.
        combined_s[:, 0 * H:1 * H] = h_new.astype(combined_s.dtype)
        combined_s[:, 1 * H:2 * H] = enc_ctx.astype(combined_s.dtype)
        combined_s[:, 2 * H:3 * H] = dec_ctx.astype(combined_s.dtype)
        m_s[...] = jnp.full_like(m_s, -jnp.inf)
        l_s[...] = jnp.zeros_like(l_s)

        # Pack the small outputs lane-dense: [h | c | enc_ctx | enc_attn | p_ptr | lse].
        pack_ref[...] = jnp.zeros_like(pack_ref)
        pack_ref[:, 0 * H:1 * H] = h_new
        pack_ref[:, 1 * H:2 * H] = c_new
        pack_ref[:, 2 * H:3 * H] = enc_ctx
        pack_ref[:, 3 * H:3 * H + S] = enc_attn
        pack_ref[:, 3 * H + S:3 * H + S + 1] = prob_ptr

    # ---- per-vocab-tile logits + online log-sum-exp ----
    logits = jnp.dot(combined_s[...], out_w_ref[...], preferred_element_type=jnp.float32)
    col = lax.broadcasted_iota(jnp.int32, logits.shape, 1) + j * tile_v
    logits = jnp.where(col < vocab_size, logits, NEG_BIG)    # mask padding / non-gen cols
    logits_ref[...] = logits

    m_new = jnp.maximum(m_s[...], jnp.max(logits, axis=-1, keepdims=True))
    l_s[...] = (l_s[...] * jnp.exp(m_s[...] - m_new)
                + jnp.sum(jnp.exp(logits - m_new), axis=-1, keepdims=True))
    m_s[...] = m_new

    @pl.when(j == pl.num_programs(0) - 1)
    def _():
        pack_ref[:, 3 * H + S + 1:3 * H + S + 2] = m_s[...] + jnp.log(l_s[...])


# --------------------------------------------------------------------------------------
# Kernel B: per-vocab-tile normalisation, pointer scatter-add and log ("parallel" grid).
# --------------------------------------------------------------------------------------
def _output_kernel(logits_ref, pack_ref, enc_idx_ref, out_ref, *, H, S, tile_v):
    j = pl.program_id(0)
    enc_attn = pack_ref[:, 3 * H:3 * H + S]
    prob_ptr = pack_ref[:, 3 * H + S:3 * H + S + 1]
    lse = pack_ref[:, 3 * H + S + 1:3 * H + S + 2]

    gen = jnp.exp(logits_ref[...] - lse)                  # softmax via global LSE (no div)
    base = (1.0 - prob_ptr) * gen

    # Pointer scatter-add restricted to this vocab tile; indices outside the tile never
    # match the equality, so no extra per-tile range check is needed (enc_idx < v_pad).
    col = lax.broadcasted_iota(jnp.int32, gen.shape, 1) + j * tile_v
    enc_idx = enc_idx_ref[...]
    w_ptr = prob_ptr * enc_attn                           # (B,S)
    terms = [jnp.where(enc_idx[:, s:s + 1] == col, w_ptr[:, s:s + 1], 0.0)
             for s in range(S)]                           # S is a compile-time constant
    contrib = _tree_sum(terms)

    out_ref[...] = jnp.log(base + contrib + VERY_SMALL_NUMBER)


# --------------------------------------------------------------------------------------
# Wrapper
# --------------------------------------------------------------------------------------
def _full_spec(shape):
    n = len(shape)
    return pl.BlockSpec(tuple(shape), lambda j, _n=n: (0,) * _n)


def _nbytes(x):
    return int(np.prod(x.shape)) * jnp.dtype(x.dtype).itemsize


def decoder_rnn_forward(embedded, rnn_state, encoder_hiddens, decoder_hiddens,
                        coverage_vector, encoder_word_idx, ext_vocab_size, params,
                        *, vocab_tile=512):
    """Single decode step mirroring DecoderRNN.forward with the module defaults."""
    h0, c0 = rnn_state
    h0, c0 = h0[0], c0[0]
    B, E = embedded.shape
    H = h0.shape[1]
    S = encoder_hiddens.shape[0]
    V = params["out_w"].shape[1]
    bf = jnp.bfloat16

    # Vocab padded lane-dense and to a multiple of the vocab tile.
    # TODO(synk): in serving, pad to a fixed maximum extended vocab to avoid recompiles.
    v_pad = _round_up(max(ext_vocab_size, V), 128)
    if v_pad > vocab_tile:
        v_pad = _round_up(v_pad, vocab_tile)
    tile_v = min(v_pad, vocab_tile)
    nv = v_pad // tile_v

    # Batch padded to a sublane multiple (cheap; padded rows are discarded on slice-out).
    B_pad = _round_up(B, 8)

    def pad_b(x):
        p = B_pad - x.shape[0]
        return x if p == 0 else jnp.pad(x, [(0, p)] + [(0, 0)] * (x.ndim - 1))

    # ---- glue: batch-major memories + step-invariant key projections.  In real
    # autoregressive use this block (and the weight prep below) is computed once per
    # sequence / per model and reused across decode steps. ----
    enc_mem = pad_b(jnp.transpose(encoder_hiddens, (1, 0, 2)))       # (Bp,S,H)
    dec_mem = pad_b(jnp.transpose(decoder_hiddens, (1, 0, 2)))       # (Bp,T,H)
    enc_memW2 = jnp.einsum('bsh,hk->bsk', enc_mem, params["enc_W2"])
    dec_memW2 = jnp.einsum('bth,hk->btk', dec_mem, params["dec_W2"])

    embedded_p = pad_b(embedded)
    h0_p, c0_p = pad_b(h0), pad_b(c0)
    cov_p = pad_b(coverage_vector)
    enc_idx_p = pad_b(encoder_word_idx.astype(jnp.int32))

    # ---- weight prep: bf16 matmul operands, fused / packed small weights ----
    fc_w_emb = params["fc_w"][:E].astype(bf)          # prev_enc_context == 0 rows dropped
    b_gates = params["b_ih"] + params["b_hh"]         # pre-summed LSTM bias
    w_ih = params["w_ih_t"].astype(bf)
    w_hh = params["w_hh_t"].astype(bf)
    enc_Wh, enc_Wc = params["enc_W"][:H], params["enc_W"][H:]
    dec_Wh, dec_Wc = params["dec_W"][:H], params["dec_W"][H:]
    attn_wh = jnp.concatenate([enc_Wh, dec_Wh], axis=1).astype(bf)   # (H,2H)
    attn_wc = jnp.concatenate([enc_Wc, dec_Wc], axis=1).astype(bf)   # (H,2H)
    enc_w3 = params["enc_W3"].T                                      # (1,H)
    dec_w3 = params["dec_W3"].T                                      # (1,H)
    pw = params["ptr_w"]                                             # (E+4H,1)
    ptr_we_row = pw[:E].T                                            # (1,E)
    ptr_wH = pw[E:, 0].reshape(4, H)                                 # rows: wh, wc, wec, wdc
    out_w_pad = jnp.pad(params["out_w"], ((0, 0), (0, v_pad - V))).astype(bf)   # (3H,Vp)

    p_pack = _round_up(3 * H + S + 2, 128)

    in_arrays = (
        embedded_p, h0_p, c0_p,
        enc_mem.astype(bf), enc_memW2, dec_mem.astype(bf), dec_memW2, cov_p,
        fc_w_emb, params["fc_b"], w_ih, w_hh, b_gates,
        attn_wh, attn_wc, enc_w3, dec_w3, params["cover_w"],
        ptr_we_row, ptr_wH, params["ptr_b"],
        out_w_pad,
    )
    in_specs = [_full_spec(a.shape) for a in in_arrays[:-1]]
    in_specs.append(pl.BlockSpec((3 * H, tile_v), lambda j: (0, j)))   # vocab-tiled out_w
    assert len(in_specs) == len(in_arrays) == 22

    out_shapes_a = (jax.ShapeDtypeStruct((B_pad, v_pad), jnp.float32),   # masked logits
                    jax.ShapeDtypeStruct((B_pad, p_pack), jnp.float32))  # packed small outs
    out_specs_a = (pl.BlockSpec((B_pad, tile_v), lambda j: (0, j)),
                   pl.BlockSpec((B_pad, p_pack), lambda j: (0, 0)))
    scratch_a = [pltpu.VMEM((B_pad, 3 * H), bf),      # combined [h|enc_ctx|dec_ctx]
                 pltpu.VMEM((B_pad, 1), jnp.float32),  # running max
                 pltpu.VMEM((B_pad, 1), jnp.float32)]  # running sum-exp

    bytes_a = (sum(_nbytes(a) for a in in_arrays[:-1])
               + 2 * 2 * 3 * H * tile_v               # double-buffered bf16 out_w tile
               + 2 * 4 * B_pad * tile_v               # logits tile buffers
               + 4 * B_pad * p_pack                   # resident packed output
               + 2 * B_pad * 3 * H + 8 * B_pad)       # scratch
    vmem_a = int(min(100 << 20, max(32 << 20, 2 * bytes_a)))

    kernel_a = functools.partial(_state_logits_kernel, vocab_size=V,
                                 tile_v=tile_v, H=H, S=S)
    logits, pack = pl.pallas_call(
        kernel_a,
        out_shape=out_shapes_a,
        grid=(nv,),
        in_specs=in_specs,
        out_specs=out_specs_a,
        scratch_shapes=scratch_a,
        compiler_params=pltpu.CompilerParams(
            dimension_semantics=("arbitrary",),        # LSE reduction over vocab tiles
            vmem_limit_bytes=vmem_a),
    )(*in_arrays)

    bytes_b = (4 * 4 * B_pad * tile_v                  # logits + out tile double buffers
               + 4 * B_pad * p_pack + 4 * B_pad * S)
    vmem_b = int(min(100 << 20, max(32 << 20, 2 * bytes_b)))

    kernel_b = functools.partial(_output_kernel, H=H, S=S, tile_v=tile_v)
    out_pad = pl.pallas_call(
        kernel_b,
        out_shape=jax.ShapeDtypeStruct((B_pad, v_pad), jnp.float32),
        grid=(nv,),
        in_specs=[pl.BlockSpec((B_pad, tile_v), lambda j: (0, j)),
                  pl.BlockSpec((B_pad, p_pack), lambda j: (0, 0)),
                  pl.BlockSpec((B_pad, S), lambda j: (0, 0))],
        out_specs=pl.BlockSpec((B_pad, tile_v), lambda j: (0, j)),
        compiler_params=pltpu.CompilerParams(
            dimension_semantics=("parallel",),         # independent vocab tiles (v7x 2 TCs)
            vmem_limit_bytes=vmem_b),
    )(logits, pack, enc_idx_p)

    output = out_pad[:B, :ext_vocab_size]
    h_new = pack[:B, 0:H]
    c_new = pack[:B, H:2 * H]
    enc_ctx = pack[:B, 2 * H:3 * H]
    enc_attn = pack[:B, 3 * H:3 * H + S]
    prob_ptr = pack[:B, 3 * H + S:3 * H + S + 1]
    return output, (h_new[None], c_new[None]), enc_attn, prob_ptr, enc_ctx


# --------------------------------------------------------------------------------------
# Plain-JAX reference (original concat-based formulation) and test harness
# --------------------------------------------------------------------------------------
def _reference_forward(embedded, h0, c0, encoder_hiddens, decoder_hiddens,
                       coverage, enc_idx, p, *, ext_vocab_size):
    B, E = embedded.shape
    H = h0.shape[1]
    V = p["out_w"].shape[1]
    enc_mem = jnp.transpose(encoder_hiddens, (1, 0, 2))
    dec_mem = jnp.transpose(decoder_hiddens, (1, 0, 2))

    prev_ctx = jnp.zeros((B, H), jnp.float32)
    dec_in = jnp.concatenate([embedded, prev_ctx], 1) @ p["fc_w"] + p["fc_b"]

    gates = dec_in @ p["w_ih_t"] + p["b_ih"] + h0 @ p["w_hh_t"] + p["b_hh"]
    i_g = jax.nn.sigmoid(gates[:, :H])
    f_g = jax.nn.sigmoid(gates[:, H:2 * H])
    g_g = jnp.tanh(gates[:, 2 * H:3 * H])
    o_g = jax.nn.sigmoid(gates[:, 3 * H:])
    c_new = f_g * c0 + i_g * g_g
    h_new = o_g * jnp.tanh(c_new)
    hidden = jnp.concatenate([h_new, c_new], 1)

    def add_attn(mem, W, W2, W3, addition=None):
        q = hidden @ W
        memW2 = jnp.einsum('bsh,hk->bsk', mem, W2)
        e = memW2 + q[:, None, :]
        if addition is not None:
            e = e + addition
        e = jnp.tanh(e)
        energy = jnp.einsum('bsh,hk->bsk', e, W3)[:, :, 0]
        attn = jax.nn.softmax(energy, axis=-1)
        ctx = jnp.einsum('bs,bsh->bh', attn, mem)
        return attn, ctx

    addition = coverage[:, :, None] * p["cover_w"][None]
    enc_attn, enc_ctx = add_attn(enc_mem, p["enc_W"], p["enc_W2"], p["enc_W3"], addition)
    _, dec_ctx = add_attn(dec_mem, p["dec_W"], p["dec_W2"], p["dec_W3"])

    combined = jnp.concatenate([h_new, enc_ctx, dec_ctx], 1)
    logits = combined @ p["out_w"]
    pgen = jnp.concatenate([embedded, hidden, enc_ctx, dec_ctx], 1)
    prob_ptr = jax.nn.sigmoid(pgen @ p["ptr_w"] + p["ptr_b"])
    gen = jax.nn.softmax(logits, axis=-1)

    out = jnp.zeros((B, ext_vocab_size), jnp.float32)
    out = out.at[:, :V].set((1.0 - prob_ptr) * gen)
    rows = jnp.arange(B)[:, None]
    out = out.at[rows, enc_idx].add(prob_ptr * enc_attn)
    out = jnp.log(out + VERY_SMALL_NUMBER)
    return out, h_new, c_new, enc_attn, prob_ptr, enc_ctx


def _init_params(key, E, H, V):
    def u(k, shape, fan_in):
        scale = 1.0 / np.sqrt(fan_in)
        return jax.random.uniform(k, shape, jnp.float32, -scale, scale)

    ks = jax.random.split(key, 16)
    return {
        "fc_w": u(ks[0], (E + H, E), E + H),
        "fc_b": u(ks[1], (1, E), E + H),
        "w_ih_t": u(ks[2], (E, 4 * H), H),
        "w_hh_t": u(ks[3], (H, 4 * H), H),
        "b_ih": u(ks[4], (1, 4 * H), H),
        "b_hh": u(ks[5], (1, 4 * H), H),
        "enc_W": u(ks[6], (2 * H, H), 2 * H),
        "enc_W2": u(ks[7], (H, H), H),
        "enc_W3": u(ks[8], (H, 1), H),
        "cover_w": u(ks[9], (1, H), H),
        "dec_W": u(ks[10], (2 * H, H), 2 * H),
        "dec_W2": u(ks[11], (H, H), H),
        "dec_W3": u(ks[12], (H, 1), H),
        "ptr_w": u(ks[13], (E + 4 * H, 1), E + 4 * H),
        "ptr_b": u(ks[14], (1, 1), E + 4 * H),
        "out_w": u(ks[15], (3 * H, V), 3 * H),
    }


if __name__ == "__main__":
    B, E, H, S, T = 2, 16, 32, 8, 4      # batch, embed, hidden, src len, past dec steps
    V, V_EXT = 50, 54                    # vocab size, extended (dynamic) vocab size

    key = jax.random.PRNGKey(0)
    kp, k1, k2, k3, k4, k5, k6, k7 = jax.random.split(key, 8)

    params = _init_params(kp, E, H, V)

    embedded = jax.random.normal(k1, (B, E), jnp.float32)
    h0 = jax.random.normal(k2, (1, B, H), jnp.float32)
    c0 = jax.random.normal(k3, (1, B, H), jnp.float32)
    encoder_hiddens = jax.random.normal(k4, (S, B, H), jnp.float32)   # (src_len, B, H)
    decoder_hiddens = jax.random.normal(k5, (T, B, H), jnp.float32)   # (past_steps, B, H)
    coverage_vector = jax.random.uniform(k6, (B, S), jnp.float32)
    encoder_word_idx = jax.random.randint(k7, (B, S), 0, V_EXT, dtype=jnp.int32)

    output, rnn_state_new, enc_attn, prob_ptr, enc_context = decoder_rnn_forward(
        embedded, (h0, c0), encoder_hiddens, decoder_hiddens,
        coverage_vector, encoder_word_idx, V_EXT, params)
    jax.block_until_ready((output, rnn_state_new, enc_attn, prob_ptr, enc_context))

    ref = jax.jit(functools.partial(_reference_forward, ext_vocab_size=V_EXT))(
        embedded, h0[0], c0[0], encoder_hiddens, decoder_hiddens,
        coverage_vector, encoder_word_idx, params)
    ref = jax.block_until_ready(ref)

    got = (output, rnn_state_new[0][0], rnn_state_new[1][0], enc_attn, prob_ptr, enc_context)
    for g, r in zip(got, ref):
        np.testing.assert_allclose(np.asarray(g), np.asarray(r), rtol=1e-2, atol=1e-2)

    assert output.shape == (B, V_EXT) and prob_ptr.shape == (B, 1)
    assert enc_attn.shape == (B, S) and enc_context.shape == (B, H)
    print("KERNEL_OK")
</pallas_src>

<mosaic_0001>
module attributes {stable_mosaic.version = 11 : i64} {
  func.func @_state_logits_kernel(%arg0: i32, %arg1: memref<8x16xf32, #tpu.memory_space<vmem>>, %arg2: memref<8x32xf32, #tpu.memory_space<vmem>>, %arg3: memref<8x32xf32, #tpu.memory_space<vmem>>, %arg4: memref<8x8x32xbf16, #tpu.memory_space<vmem>>, %arg5: memref<8x8x32xf32, #tpu.memory_space<vmem>>, %arg6: memref<8x4x32xbf16, #tpu.memory_space<vmem>>, %arg7: memref<8x4x32xf32, #tpu.memory_space<vmem>>, %arg8: memref<8x8xf32, #tpu.memory_space<vmem>>, %arg9: memref<16x16xbf16, #tpu.memory_space<vmem>>, %arg10: memref<1x16xf32, #tpu.memory_space<vmem>>, %arg11: memref<16x128xbf16, #tpu.memory_space<vmem>>, %arg12: memref<32x128xbf16, #tpu.memory_space<vmem>>, %arg13: memref<1x128xf32, #tpu.memory_space<vmem>>, %arg14: memref<32x64xbf16, #tpu.memory_space<vmem>>, %arg15: memref<32x64xbf16, #tpu.memory_space<vmem>>, %arg16: memref<1x32xf32, #tpu.memory_space<vmem>>, %arg17: memref<1x32xf32, #tpu.memory_space<vmem>>, %arg18: memref<1x32xf32, #tpu.memory_space<vmem>>, %arg19: memref<1x16xf32, #tpu.memory_space<vmem>>, %arg20: memref<4x32xf32, #tpu.memory_space<vmem>>, %arg21: memref<1x1xf32, #tpu.memory_space<vmem>>, %arg22: memref<96x128xbf16, #tpu.memory_space<vmem>>, %arg23: memref<8x128xf32, #tpu.memory_space<vmem>>, %arg24: memref<8x128xf32, #tpu.memory_space<vmem>>, %arg25: memref<8x96xbf16, #tpu.memory_space<vmem>>, %arg26: memref<8x1xf32, #tpu.memory_space<vmem>>, %arg27: memref<8x1xf32, #tpu.memory_space<vmem>>) attributes {dimension_semantics = [#tpu.dimension_semantics<arbitrary>], iteration_bounds = array<i64: 1>, scalar_prefetch = 0 : i64, scratch_operands = 3 : i64, tpu.core_type = #tpu.core_type<tc>, window_params = [{pipeline_mode = #tpu.pipeline_mode<synchronous>, transform_indices = @transform_0, window_bounds = array<i64: 8, 16>}, {pipeline_mode = #tpu.pipeline_mode<synchronous>, transform_indices = @transform_1, window_bounds = array<i64: 8, 32>}, {pipeline_mode = #tpu.pipeline_mode<synchronous>, transform_indices = @transform_2, window_bounds = array<i64: 8, 32>}, {pipeline_mode = #tpu.pipeline_mode<synchronous>, transform_indices = @transform_3, window_bounds = array<i64: 8, 8, 32>}, {pipeline_mode = #tpu.pipeline_mode<synchronous>, transform_indices = @transform_4, window_bounds = array<i64: 8, 8, 32>}, {pipeline_mode = #tpu.pipeline_mode<synchronous>, transform_indices = @transform_5, window_bounds = array<i64: 8, 4, 32>}, {pipeline_mode = #tpu.pipeline_mode<synchronous>, transform_indices = @transform_6, window_bounds = array<i64: 8, 4, 32>}, {pipeline_mode = #tpu.pipeline_mode<synchronous>, transform_indices = @transform_7, window_bounds = array<i64: 8, 8>}, {pipeline_mode = #tpu.pipeline_mode<synchronous>, transform_indices = @transform_8, window_bounds = array<i64: 16, 16>}, {pipeline_mode = #tpu.pipeline_mode<synchronous>, transform_indices = @transform_9, window_bounds = array<i64: 1, 16>}, {pipeline_mode = #tpu.pipeline_mode<synchronous>, transform_indices = @transform_10, window_bounds = array<i64: 16, 128>}, {pipeline_mode = #tpu.pipeline_mode<synchronous>, transform_indices = @transform_11, window_bounds = array<i64: 32, 128>}, {pipeline_mode = #tpu.pipeline_mode<synchronous>, transform_indices = @transform_12, window_bounds = array<i64: 1, 128>}, {pipeline_mode = #tpu.pipeline_mode<synchronous>, transform_indices = @transform_13, window_bounds = array<i64: 32, 64>}, {pipeline_mode = #tpu.pipeline_mode<synchronous>, transform_indices = @transform_14, window_bounds = array<i64: 32, 64>}, {pipeline_mode = #tpu.pipeline_mode<synchronous>, transform_indices = @transform_15, window_bounds = array<i64: 1, 32>}, {pipeline_mode = #tpu.pipeline_mode<synchronous>, transform_indices = @transform_16, window_bounds = array<i64: 1, 32>}, {pipeline_mode = #tpu.pipeline_mode<synchronous>, transform_indices = @transform_17, window_bounds = array<i64: 1, 32>}, {pipeline_mode = #tpu.pipeline_mode<synchronous>, transform_indices = @transform_18, window_bounds = array<i64: 1, 16>}, {pipeline_mode = #tpu.pipeline_mode<synchronous>, transform_indices = @transform_19, window_bounds = array<i64: 4, 32>}, {pipeline_mode = #tpu.pipeline_mode<synchronous>, transform_indices = @transform_20, window_bounds = array<i64: 1, 1>}, {transform_indices = @transform_21, window_bounds = array<i64: 96, 128>}, {transform_indices = @transform_22, window_bounds = array<i64: 8, 128>}, {pipeline_mode = #tpu.pipeline_mode<synchronous>, transform_indices = @transform_23, window_bounds = array<i64: 8, 128>}]} {
    %c0_i32 = arith.constant 0 : i32
    %0 = arith.cmpi eq, %arg0, %c0_i32 : i32
    %1 = arith.extui %0 : i1 to i32
    %c0_i32_0 = arith.constant 0 : i32
    %2 = arith.cmpi ne, %1, %c0_i32_0 : i32
    scf.if %2 {
      %c0_21 = arith.constant 0 : index
      %c0_22 = arith.constant 0 : index
      %35 = vector.load %arg1[%c0_21, %c0_22] : memref<8x16xf32, #tpu.memory_space<vmem>>, vector<8x16xf32>
      %c0_23 = arith.constant 0 : index
      %c0_24 = arith.constant 0 : index
      %36 = vector.load %arg2[%c0_23, %c0_24] : memref<8x32xf32, #tpu.memory_space<vmem>>, vector<8x32xf32>
      %c0_25 = arith.constant 0 : index
      %c0_26 = arith.constant 0 : index
      %37 = vector.load %arg3[%c0_25, %c0_26] : memref<8x32xf32, #tpu.memory_space<vmem>>, vector<8x32xf32>
      %c0_27 = arith.constant 0 : index
      %c0_28 = arith.constant 0 : index
      %38 = vector.load %arg9[%c0_27, %c0_28] : memref<16x16xbf16, #tpu.memory_space<vmem>>, vector<16x16xbf16>
      %39 = arith.truncf %35 : vector<8x16xf32> to vector<8x16xbf16>
      %cst_29 = arith.constant dense<0.000000e+00> : vector<8x16xf32>
      %40 = tpu.matmul %39, %38, %cst_29 {dimension_numbers = #tpu.dot_dimension_numbers<[1], [0], [0], [1], [0, 0, 1, 1], [], []>} : vector<8x16xbf16>, vector<16x16xbf16>, vector<8x16xf32> -> vector<8x16xf32>
      %c0_30 = arith.constant 0 : index
      %c0_31 = arith.constant 0 : index
      %41 = vector.load %arg10[%c0_30, %c0_31] : memref<1x16xf32, #tpu.memory_space<vmem>>, vector<1x16xf32>
      %42 = vector.broadcast %41 : vector<1x16xf32> to vector<8x16xf32>
      %43 = arith.addf %40, %42 : vector<8x16xf32>
      %c0_32 = arith.constant 0 : index
      %c0_33 = arith.constant 0 : index
      %44 = vector.load %arg11[%c0_32, %c0_33] : memref<16x128xbf16, #tpu.memory_space<vmem>>, vector<16x128xbf16>
      %45 = arith.truncf %43 : vector<8x16xf32> to vector<8x16xbf16>
      %cst_34 = arith.constant dense<0.000000e+00> : vector<8x128xf32>
      %46 = tpu.matmul %45, %44, %cst_34 {dimension_numbers = #tpu.dot_dimension_numbers<[1], [0], [0], [1], [0, 0, 1, 1], [], []>} : vector<8x16xbf16>, vector<16x128xbf16>, vector<8x128xf32> -> vector<8x128xf32>
      %c0_35 = arith.constant 0 : index
      %c0_36 = arith.constant 0 : index
      %47 = vector.load %arg12[%c0_35, %c0_36] : memref<32x128xbf16, #tpu.memory_space<vmem>>, vector<32x128xbf16>
      %48 = arith.truncf %36 : vector<8x32xf32> to vector<8x32xbf16>
      %cst_37 = arith.constant dense<0.000000e+00> : vector<8x128xf32>
      %49 = tpu.matmul %48, %47, %cst_37 {dimension_numbers = #tpu.dot_dimension_numbers<[1], [0], [0], [1], [0, 0, 1, 1], [], []>} : vector<8x32xbf16>, vector<32x128xbf16>, vector<8x128xf32> -> vector<8x128xf32>
      %50 = arith.addf %46, %49 : vector<8x128xf32>
      %c0_38 = arith.constant 0 : index
      %c0_39 = arith.constant 0 : index
      %51 = vector.load %arg13[%c0_38, %c0_39] : memref<1x128xf32, #tpu.memory_space<vmem>>, vector<1x128xf32>
      %52 = vector.broadcast %51 : vector<1x128xf32> to vector<8x128xf32>
      %53 = arith.addf %50, %52 : vector<8x128xf32>
      %54 = vector.extract_strided_slice %53 {offsets = [0, 0], sizes = [8, 32], strides = [1, 1]} : vector<8x128xf32> to vector<8x32xf32>
      %55 = math.absf %54 : vector<8x32xf32>
      %cst_40 = arith.constant 0.000000e+00 : f32
      %56 = vector.broadcast %cst_40 : f32 to vector<8x32xf32>
      %57 = arith.subf %56, %55 : vector<8x32xf32>
      %58 = math.exp %57 : vector<8x32xf32>
      %cst_41 = arith.constant 0.000000e+00 : f32
      %59 = vector.broadcast %cst_41 : f32 to vector<8x32xf32>
      %60 = arith.cmpf oge, %54, %59 : vector<8x32xf32>
      %cst_42 = arith.constant 1.000000e+00 : f32
      %61 = vector.broadcast %cst_42 : f32 to vector<8x32xf32>
      %62 = arith.addf %61, %58 : vector<8x32xf32>
      %cst_43 = arith.constant 1.000000e+00 : f32
      %63 = vector.broadcast %cst_43 : f32 to vector<8x32xf32>
      %64 = arith.divf %63, %62 : vector<8x32xf32>
      %cst_44 = arith.constant 1.000000e+00 : f32
      %65 = vector.broadcast %cst_44 : f32 to vector<8x32xf32>
      %66 = arith.addf %65, %58 : vector<8x32xf32>
      %67 = arith.divf %58, %66 : vector<8x32xf32>
      %68 = arith.select %60, %64, %67 : vector<8x32xi1>, vector<8x32xf32>
      %69 = vector.extract_strided_slice %53 {offsets = [0, 32], sizes = [8, 32], strides = [1, 1]} : vector<8x128xf32> to vector<8x32xf32>
      %70 = math.absf %69 : vector<8x32xf32>
      %cst_45 = arith.constant 0.000000e+00 : f32
      %71 = vector.broadcast %cst_45 : f32 to vector<8x32xf32>
      %72 = arith.subf %71, %70 : vector<8x32xf32>
      %73 = math.exp %72 : vector<8x32xf32>
      %cst_46 = arith.constant 0.000000e+00 : f32
      %74 = vector.broadcast %cst_46 : f32 to vector<8x32xf32>
      %75 = arith.cmpf oge, %69, %74 : vector<8x32xf32>
      %cst_47 = arith.constant 1.000000e+00 : f32
      %76 = vector.broadcast %cst_47 : f32 to vector<8x32xf32>
      %77 = arith.addf %76, %73 : vector<8x32xf32>
      %cst_48 = arith.constant 1.000000e+00 : f32
      %78 = vector.broadcast %cst_48 : f32 to vector<8x32xf32>
      %79 = arith.divf %78, %77 : vector<8x32xf32>
      %cst_49 = arith.constant 1.000000e+00 : f32
      %80 = vector.broadcast %cst_49 : f32 to vector<8x32xf32>
      %81 = arith.addf %80, %73 : vector<8x32xf32>
      %82 = arith.divf %73, %81 : vector<8x32xf32>
      %83 = arith.select %75, %79, %82 : vector<8x32xi1>, vector<8x32xf32>
      %84 = vector.extract_strided_slice %53 {offsets = [0, 64], sizes = [8, 32], strides = [1, 1]} : vector<8x128xf32> to vector<8x32xf32>
      %85 = math.tanh %84 : vector<8x32xf32>
      %86 = vector.extract_strided_slice %53 {offsets = [0, 96], sizes = [8, 32], strides = [1, 1]} : vector<8x128xf32> to vector<8x32xf32>
      %87 = math.absf %86 : vector<8x32xf32>
      %cst_50 = arith.constant 0.000000e+00 : f32
      %88 = vector.broadcast %cst_50 : f32 to vector<8x32xf32>
      %89 = arith.subf %88, %87 : vector<8x32xf32>
      %90 = math.exp %89 : vector<8x32xf32>
      %cst_51 = arith.constant 0.000000e+00 : f32
      %91 = vector.broadcast %cst_51 : f32 to vector<8x32xf32>
      %92 = arith.cmpf oge, %86, %91 : vector<8x32xf32>
      %cst_52 = arith.constant 1.000000e+00 : f32
      %93 = vector.broadcast %cst_52 : f32 to vector<8x32xf32>
      %94 = arith.addf %93, %90 : vector<8x32xf32>
      %cst_53 = arith.constant 1.000000e+00 : f32
      %95 = vector.broadcast %cst_53 : f32 to vector<8x32xf32>
      %96 = arith.divf %95, %94 : vector<8x32xf32>
      %cst_54 = arith.constant 1.000000e+00 : f32
      %97 = vector.broadcast %cst_54 : f32 to vector<8x32xf32>
      %98 = arith.addf %97, %90 : vector<8x32xf32>
      %99 = arith.divf %90, %98 : vector<8x32xf32>
      %100 = arith.select %92, %96, %99 : vector<8x32xi1>, vector<8x32xf32>
      %101 = arith.mulf %83, %37 : vector<8x32xf32>
      %102 = arith.mulf %68, %85 : vector<8x32xf32>
      %103 = arith.addf %101, %102 : vector<8x32xf32>
      %104 = math.tanh %103 : vector<8x32xf32>
      %105 = arith.mulf %100, %104 : vector<8x32xf32>
      %c0_55 = arith.constant 0 : index
      %c0_56 = arith.constant 0 : index
      %106 = vector.load %arg14[%c0_55, %c0_56] : memref<32x64xbf16, #tpu.memory_space<vmem>>, vector<32x64xbf16>
      %107 = arith.truncf %105 : vector<8x32xf32> to vector<8x32xbf16>
      %cst_57 = arith.constant dense<0.000000e+00> : vector<8x64xf32>
      %108 = tpu.matmul %107, %106, %cst_57 {dimension_numbers = #tpu.dot_dimension_numbers<[1], [0], [0], [1], [0, 0, 1, 1], [], []>} : vector<8x32xbf16>, vector<32x64xbf16>, vector<8x64xf32> -> vector<8x64xf32>
      %c0_58 = arith.constant 0 : index
      %c0_59 = arith.constant 0 : index
      %109 = vector.load %arg15[%c0_58, %c0_59] : memref<32x64xbf16, #tpu.memory_space<vmem>>, vector<32x64xbf16>
      %110 = arith.truncf %103 : vector<8x32xf32> to vector<8x32xbf16>
      %cst_60 = arith.constant dense<0.000000e+00> : vector<8x64xf32>
      %111 = tpu.matmul %110, %109, %cst_60 {dimension_numbers = #tpu.dot_dimension_numbers<[1], [0], [0], [1], [0, 0, 1, 1], [], []>} : vector<8x32xbf16>, vector<32x64xbf16>, vector<8x64xf32> -> vector<8x64xf32>
      %112 = arith.addf %108, %111 : vector<8x64xf32>
      %113 = vector.extract_strided_slice %112 {offsets = [0, 0], sizes = [8, 32], strides = [1, 1]} : vector<8x64xf32> to vector<8x32xf32>
      %114 = vector.extract_strided_slice %112 {offsets = [0, 32], sizes = [8, 32], strides = [1, 1]} : vector<8x64xf32> to vector<8x32xf32>
      %c0_61 = arith.constant 0 : index
      %c0_62 = arith.constant 0 : index
      %115 = vector.load %arg8[%c0_61, %c0_62] : memref<8x8xf32, #tpu.memory_space<vmem>>, vector<8x8xf32>
      %116 = vector.shape_cast %115 : vector<8x8xf32> to vector<8x8x1xf32>
      %c0_63 = arith.constant 0 : index
      %c0_64 = arith.constant 0 : index
      %117 = vector.load %arg18[%c0_63, %c0_64] : memref<1x32xf32, #tpu.memory_space<vmem>>, vector<1x32xf32>
      %118 = vector.shape_cast %117 : vector<1x32xf32> to vector<1x1x32xf32>
      %119 = vector.broadcast %116 : vector<8x8x1xf32> to vector<8x8x32xf32>
      %120 = vector.broadcast %118 : vector<1x1x32xf32> to vector<8x8x32xf32>
      %121 = arith.mulf %119, %120 : vector<8x8x32xf32>
      %c0_65 = arith.constant 0 : index
      %c0_66 = arith.constant 0 : index
      %c0_67 = arith.constant 0 : index
      %122 = vector.load %arg5[%c0_65, %c0_66, %c0_67] : memref<8x8x32xf32, #tpu.memory_space<vmem>>, vector<8x8x32xf32>
      %123 = vector.shape_cast %113 : vector<8x32xf32> to vector<8x1x32xf32>
      %124 = vector.broadcast %123 : vector<8x1x32xf32> to vector<8x8x32xf32>
      %125 = arith.addf %122, %124 : vector<8x8x32xf32>
      %126 = arith.addf %125, %121 : vector<8x8x32xf32>
      %127 = math.tanh %126 : vector<8x8x32xf32>
      %c0_68 = arith.constant 0 : index
      %c0_69 = arith.constant 0 : index
      %128 = vector.load %arg16[%c0_68, %c0_69] : memref<1x32xf32, #tpu.memory_space<vmem>>, vector<1x32xf32>
      %129 = vector.shape_cast %128 : vector<1x32xf32> to vector<1x1x32xf32>
      %130 = vector.broadcast %129 : vector<1x1x32xf32> to vector<8x8x32xf32>
      %131 = arith.mulf %127, %130 : vector<8x8x32xf32>
      %cst_70 = arith.constant dense<0.000000e+00> : vector<8x8xf32>
      %132 = vector.multi_reduction <add>, %131, %cst_70 [2] : vector<8x8x32xf32> to vector<8x8xf32>
      %cst_71 = arith.constant dense<0xFF800000> : vector<8xf32>
      %133 = vector.multi_reduction <maximumf>, %132, %cst_71 [1] : vector<8x8xf32> to vector<8xf32>
      %134 = vector.shape_cast %133 : vector<8xf32> to vector<8x1xf32>
      %135 = vector.broadcast %134 : vector<8x1xf32> to vector<8x8xf32>
      %136 = arith.subf %132, %135 : vector<8x8xf32>
      %137 = math.exp %136 : vector<8x8xf32>
      %cst_72 = arith.constant dense<0.000000e+00> : vector<8xf32>
      %138 = vector.multi_reduction <add>, %137, %cst_72 [1] : vector<8x8xf32> to vector<8xf32>
      %139 = vector.shape_cast %138 : vector<8xf32> to vector<8x1xf32>
      %140 = tpu.reciprocal %139 {approx = true} : vector<8x1xf32> -> vector<8x1xf32>
      %141 = vector.broadcast %140 : vector<8x1xf32> to vector<8x8xf32>
      %142 = arith.mulf %137, %141 : vector<8x8xf32>
      %143 = vector.shape_cast %142 : vector<8x8xf32> to vector<8x8x1xf32>
      %c0_73 = arith.constant 0 : index
      %c0_74 = arith.constant 0 : index
      %c0_75 = arith.constant 0 : index
      %144 = vector.load %arg4[%c0_73, %c0_74, %c0_75] : memref<8x8x32xbf16, #tpu.memory_space<vmem>>, vector<8x8x32xbf16>
      %145 = arith.extf %144 : vector<8x8x32xbf16> to vector<8x8x32xf32>
      %146 = vector.broadcast %143 : vector<8x8x1xf32> to vector<8x8x32xf32>
      %147 = arith.mulf %146, %145 : vector<8x8x32xf32>
      %cst_76 = arith.constant dense<0.000000e+00> : vector<8x32xf32>
      %148 = vector.multi_reduction <add>, %147, %cst_76 [1] : vector<8x8x32xf32> to vector<8x32xf32>
      %c0_77 = arith.constant 0 : index
      %c0_78 = arith.constant 0 : index
      %c0_79 = arith.constant 0 : index
      %149 = vector.load %arg7[%c0_77, %c0_78, %c0_79] : memref<8x4x32xf32, #tpu.memory_space<vmem>>, vector<8x4x32xf32>
      %150 = vector.shape_cast %114 : vector<8x32xf32> to vector<8x1x32xf32>
      %151 = vector.broadcast %150 : vector<8x1x32xf32> to vector<8x4x32xf32>
      %152 = arith.addf %149, %151 : vector<8x4x32xf32>
      %153 = math.tanh %152 : vector<8x4x32xf32>
      %c0_80 = arith.constant 0 : index
      %c0_81 = arith.constant 0 : index
      %154 = vector.load %arg17[%c0_80, %c0_81] : memref<1x32xf32, #tpu.memory_space<vmem>>, vector<1x32xf32>
      %155 = vector.shape_cast %154 : vector<1x32xf32> to vector<1x1x32xf32>
      %156 = vector.broadcast %155 : vector<1x1x32xf32> to vector<8x4x32xf32>
      %157 = arith.mulf %153, %156 : vector<8x4x32xf32>
      %cst_82 = arith.constant dense<0.000000e+00> : vector<8x4xf32>
      %158 = vector.multi_reduction <add>, %157, %cst_82 [2] : vector<8x4x32xf32> to vector<8x4xf32>
      %cst_83 = arith.constant dense<0xFF800000> : vector<8xf32>
      %159 = vector.multi_reduction <maximumf>, %158, %cst_83 [1] : vector<8x4xf32> to vector<8xf32>
      %160 = vector.shape_cast %159 : vector<8xf32> to vector<8x1xf32>
      %161 = vector.broadcast %160 : vector<8x1xf32> to vector<8x4xf32>
      %162 = arith.subf %158, %161 : vector<8x4xf32>
      %163 = math.exp %162 : vector<8x4xf32>
      %cst_84 = arith.constant dense<0.000000e+00> : vector<8xf32>
      %164 = vector.multi_reduction <add>, %163, %cst_84 [1] : vector<8x4xf32> to vector<8xf32>
      %165 = vector.shape_cast %164 : vector<8xf32> to vector<8x1xf32>
      %166 = tpu.reciprocal %165 {approx = true} : vector<8x1xf32> -> vector<8x1xf32>
      %167 = vector.broadcast %166 : vector<8x1xf32> to vector<8x4xf32>
      %168 = arith.mulf %163, %167 : vector<8x4xf32>
      %169 = vector.shape_cast %168 : vector<8x4xf32> to vector<8x4x1xf32>
      %c0_85 = arith.constant 0 : index
      %c0_86 = arith.constant 0 : index
      %c0_87 = arith.constant 0 : index
      %170 = vector.load %arg6[%c0_85, %c0_86, %c0_87] : memref<8x4x32xbf16, #tpu.memory_space<vmem>>, vector<8x4x32xbf16>
      %171 = arith.extf %170 : vector<8x4x32xbf16> to vector<8x4x32xf32>
      %172 = vector.broadcast %169 : vector<8x4x1xf32> to vector<8x4x32xf32>
      %173 = arith.mulf %172, %171 : vector<8x4x32xf32>
      %cst_88 = arith.constant dense<0.000000e+00> : vector<8x32xf32>
      %174 = vector.multi_reduction <add>, %173, %cst_88 [1] : vector<8x4x32xf32> to vector<8x32xf32>
      %c0_89 = arith.constant 0 : index
      %c0_90 = arith.constant 0 : index
      %175 = vector.load %arg20[%c0_89, %c0_90] : memref<4x32xf32, #tpu.memory_space<vmem>>, vector<4x32xf32>
      %176 = vector.extract_strided_slice %175 {offsets = [0, 0], sizes = [1, 32], strides = [1, 1]} : vector<4x32xf32> to vector<1x32xf32>
      %177 = vector.broadcast %176 : vector<1x32xf32> to vector<8x32xf32>
      %178 = arith.mulf %105, %177 : vector<8x32xf32>
      %179 = vector.extract_strided_slice %175 {offsets = [1, 0], sizes = [1, 32], strides = [1, 1]} : vector<4x32xf32> to vector<1x32xf32>
      %180 = vector.broadcast %179 : vector<1x32xf32> to vector<8x32xf32>
      %181 = arith.mulf %103, %180 : vector<8x32xf32>
      %182 = arith.addf %178, %181 : vector<8x32xf32>
      %183 = vector.extract_strided_slice %175 {offsets = [2, 0], sizes = [1, 32], strides = [1, 1]} : vector<4x32xf32> to vector<1x32xf32>
      %184 = vector.broadcast %183 : vector<1x32xf32> to vector<8x32xf32>
      %185 = arith.mulf %148, %184 : vector<8x32xf32>
      %186 = arith.addf %182, %185 : vector<8x32xf32>
      %187 = vector.extract_strided_slice %175 {offsets = [3, 0], sizes = [1, 32], strides = [1, 1]} : vector<4x32xf32> to vector<1x32xf32>
      %188 = vector.broadcast %187 : vector<1x32xf32> to vector<8x32xf32>
      %189 = arith.mulf %174, %188 : vector<8x32xf32>
      %190 = arith.addf %186, %189 : vector<8x32xf32>
      %c0_91 = arith.constant 0 : index
      %c0_92 = arith.constant 0 : index
      %191 = vector.load %arg19[%c0_91, %c0_92] : memref<1x16xf32, #tpu.memory_space<vmem>>, vector<1x16xf32>
      %192 = vector.broadcast %191 : vector<1x16xf32> to vector<8x16xf32>
      %193 = arith.mulf %35, %192 : vector<8x16xf32>
      %cst_93 = arith.constant dense<0.000000e+00> : vector<8xf32>
      %194 = vector.multi_reduction <add>, %193, %cst_93 [1] : vector<8x16xf32> to vector<8xf32>
      %195 = vector.shape_cast %194 : vector<8xf32> to vector<8x1xf32>
      %cst_94 = arith.constant dense<0.000000e+00> : vector<8xf32>
      %196 = vector.multi_reduction <add>, %190, %cst_94 [1] : vector<8x32xf32> to vector<8xf32>
      %197 = vector.shape_cast %196 : vector<8xf32> to vector<8x1xf32>
      %198 = arith.addf %195, %197 : vector<8x1xf32>
      %c0_95 = arith.constant 0 : index
      %c0_96 = arith.constant 0 : index
      %199 = vector.load %arg21[%c0_95, %c0_96] : memref<1x1xf32, #tpu.memory_space<vmem>>, vector<1x1xf32>
      %200 = vector.broadcast %199 : vector<1x1xf32> to vector<8x1xf32>
      %201 = arith.addf %198, %200 : vector<8x1xf32>
      %202 = math.absf %201 : vector<8x1xf32>
      %cst_97 = arith.constant 0.000000e+00 : f32
      %203 = vector.broadcast %cst_97 : f32 to vector<8x1xf32>
      %204 = arith.subf %203, %202 : vector<8x1xf32>
      %205 = math.exp %204 : vector<8x1xf32>
      %cst_98 = arith.constant 0.000000e+00 : f32
      %206 = vector.broadcast %cst_98 : f32 to vector<8x1xf32>
      %207 = arith.cmpf oge, %201, %206 : vector<8x1xf32>
      %cst_99 = arith.constant 1.000000e+00 : f32
      %208 = vector.broadcast %cst_99 : f32 to vector<8x1xf32>
      %209 = arith.addf %208, %205 : vector<8x1xf32>
      %cst_100 = arith.constant 1.000000e+00 : f32
      %210 = vector.broadcast %cst_100 : f32 to vector<8x1xf32>
      %211 = arith.divf %210, %209 : vector<8x1xf32>
      %cst_101 = arith.constant 1.000000e+00 : f32
      %212 = vector.broadcast %cst_101 : f32 to vector<8x1xf32>
      %213 = arith.addf %212, %205 : vector<8x1xf32>
      %214 = arith.divf %205, %213 : vector<8x1xf32>
      %215 = arith.select %207, %211, %214 : vector<8x1xi1>, vector<8x1xf32>
      %216 = arith.truncf %105 : vector<8x32xf32> to vector<8x32xbf16>
      %c0_102 = arith.constant 0 : index
      %c0_103 = arith.constant 0 : index
      %217 = vector.load %arg25[%c0_102, %c0_103] : memref<8x96xbf16, #tpu.memory_space<vmem>>, vector<8x32xbf16>
      tpu.vector_store %arg25[%c0_102, %c0_103], %216 {strides = array<i32>} : memref<8x96xbf16, #tpu.memory_space<vmem>>, vector<8x32xbf16>,
      %218 = arith.truncf %148 : vector<8x32xf32> to vector<8x32xbf16>
      %c0_104 = arith.constant 0 : index
      %c32 = arith.constant 32 : index
      %219 = vector.load %arg25[%c0_104, %c32] : memref<8x96xbf16, #tpu.memory_space<vmem>>, vector<8x32xbf16>
      tpu.vector_store %arg25[%c0_104, %c32], %218 {strides = array<i32>} : memref<8x96xbf16, #tpu.memory_space<vmem>>, vector<8x32xbf16>,
      %220 = arith.truncf %174 : vector<8x32xf32> to vector<8x32xbf16>
      %c0_105 = arith.constant 0 : index
      %c64 = arith.constant 64 : index
      %221 = vector.load %arg25[%c0_105, %c64] : memref<8x96xbf16, #tpu.memory_space<vmem>>, vector<8x32xbf16>
      tpu.vector_store %arg25[%c0_105, %c64], %220 {strides = array<i32>} : memref<8x96xbf16, #tpu.memory_space<vmem>>, vector<8x32xbf16>,
      %cst_106 = arith.constant 0xFF800000 : f32
      %222 = vector.broadcast %cst_106 : f32 to vector<8x1xf32>
      %c0_107 = arith.constant 0 : index
      %c0_108 = arith.constant 0 : index
      %223 = vector.load %arg26[%c0_107, %c0_108] : memref<8x1xf32, #tpu.memory_space<vmem>>, vector<8x1xf32>
      tpu.vector_store %arg26[%c0_107, %c0_108], %222 {strides = array<i32>} : memref<8x1xf32, #tpu.memory_space<vmem>>, vector<8x1xf32>,
      %cst_109 = arith.constant 0.000000e+00 : f32
      %224 = vector.broadcast %cst_109 : f32 to vector<8x1xf32>
      %c0_110 = arith.constant 0 : index
      %c0_111 = arith.constant 0 : index
      %225 = vector.load %arg27[%c0_110, %c0_111] : memref<8x1xf32, #tpu.memory_space<vmem>>, vector<8x1xf32>
      tpu.vector_store %arg27[%c0_110, %c0_111], %224 {strides = array<i32>} : memref<8x1xf32, #tpu.memory_space<vmem>>, vector<8x1xf32>,
      %cst_112 = arith.constant 0.000000e+00 : f32
      %226 = vector.broadcast %cst_112 : f32 to vector<8x128xf32>
      %c0_113 = arith.constant 0 : index
      %c0_114 = arith.constant 0 : index
      %227 = vector.load %arg24[%c0_113, %c0_114] : memref<8x128xf32, #tpu.memory_space<vmem>>, vector<8x128xf32>
      tpu.vector_store %arg24[%c0_113, %c0_114], %226 {strides = array<i32>} : memref<8x128xf32, #tpu.memory_space<vmem>>, vector<8x128xf32>,
      %c0_115 = arith.constant 0 : index
      %c0_116 = arith.constant 0 : index
      %228 = vector.load %arg24[%c0_115, %c0_116] : memref<8x128xf32, #tpu.memory_space<vmem>>, vector<8x32xf32>
      tpu.vector_store %arg24[%c0_115, %c0_116], %105 {strides = array<i32>} : memref<8x128xf32, #tpu.memory_space<vmem>>, vector<8x32xf32>,
      %c0_117 = arith.constant 0 : index
      %c32_118 = arith.constant 32 : index
      %229 = vector.load %arg24[%c0_117, %c32_118] : memref<8x128xf32, #tpu.memory_space<vmem>>, vector<8x32xf32>
      tpu.vector_store %arg24[%c0_117, %c32_118], %103 {strides = array<i32>} : memref<8x128xf32, #tpu.memory_space<vmem>>, vector<8x32xf32>,
      %c0_119 = arith.constant 0 : index
      %c64_120 = arith.constant 64 : index
      %230 = vector.load %arg24[%c0_119, %c64_120] : memref<8x128xf32, #tpu.memory_space<vmem>>, vector<8x32xf32>
      tpu.vector_store %arg24[%c0_119, %c64_120], %148 {strides = array<i32>} : memref<8x128xf32, #tpu.memory_space<vmem>>, vector<8x32xf32>,
      %c0_121 = arith.constant 0 : index
      %c96 = arith.constant 96 : index
      %231 = vector.load %arg24[%c0_121, %c96] : memref<8x128xf32, #tpu.memory_space<vmem>>, vector<8x8xf32>
      tpu.vector_store %arg24[%c0_121, %c96], %142 {strides = array<i32>} : memref<8x128xf32, #tpu.memory_space<vmem>>, vector<8x8xf32>,
      %c0_122 = arith.constant 0 : index
      %c104 = arith.constant 104 : index
      %232 = vector.load %arg24[%c0_122, %c104] : memref<8x128xf32, #tpu.memory_space<vmem>>, vector<8x1xf32>
      tpu.vector_store %arg24[%c0_122, %c104], %215 {strides = array<i32>} : memref<8x128xf32, #tpu.memory_space<vmem>>, vector<8x1xf32>,
    } else {
    }
    %c0 = arith.constant 0 : index
    %c0_1 = arith.constant 0 : index
    %3 = vector.load %arg25[%c0, %c0_1] : memref<8x96xbf16, #tpu.memory_space<vmem>>, vector<8x96xbf16>
    %c0_2 = arith.constant 0 : index
    %c0_3 = arith.constant 0 : index
    %4 = vector.load %arg22[%c0_2, %c0_3] : memref<96x128xbf16, #tpu.memory_space<vmem>>, vector<96x128xbf16>
    %cst = arith.constant dense<0.000000e+00> : vector<8x128xf32>
    %5 = tpu.matmul %3, %4, %cst {dimension_numbers = #tpu.dot_dimension_numbers<[1], [0], [0], [1], [0, 0, 1, 1], [], []>} : vector<8x96xbf16>, vector<96x128xbf16>, vector<8x128xf32> -> vector<8x128xf32>
    %6 = tpu.iota {dimensions = array<i32: 1>} : vector<8x128xi32>
    %c128_i32 = arith.constant 128 : i32
    %7 = arith.muli %arg0, %c128_i32 : i32
    %8 = vector.broadcast %7 : i32 to vector<8x128xi32>
    %9 = arith.addi %6, %8 : vector<8x128xi32>
    %c50_i32 = arith.constant 50 : i32
    %10 = vector.broadcast %c50_i32 : i32 to vector<8x128xi32>
    %11 = arith.cmpi slt, %9, %10 : vector<8x128xi32>
    %cst_4 = arith.constant -1.000000e+30 : f32
    %12 = vector.broadcast %cst_4 : f32 to vector<8x128xf32>
    %13 = arith.select %11, %5, %12 : vector<8x128xi1>, vector<8x128xf32>
    %c0_5 = arith.constant 0 : index
    %c0_6 = arith.constant 0 : index
    %14 = vector.load %arg23[%c0_5, %c0_6] : memref<8x128xf32, #tpu.memory_space<vmem>>, vector<8x128xf32>
    tpu.vector_store %arg23[%c0_5, %c0_6], %13 {strides = array<i32>} : memref<8x128xf32, #tpu.memory_space<vmem>>, vector<8x128xf32>,
    %c0_7 = arith.constant 0 : index
    %c0_8 = arith.constant 0 : index
    %15 = vector.load %arg26[%c0_7, %c0_8] : memref<8x1xf32, #tpu.memory_space<vmem>>, vector<8x1xf32>
    %cst_9 = arith.constant dense<0xFF800000> : vector<8xf32>
    %16 = vector.multi_reduction <maximumf>, %13, %cst_9 [1] : vector<8x128xf32> to vector<8xf32>
    %17 = vector.shape_cast %16 : vector<8xf32> to vector<8x1xf32>
    %18 = arith.maximumf %15, %17 : vector<8x1xf32>
    %c0_10 = arith.constant 0 : index
    %c0_11 = arith.constant 0 : index
    %19 = vector.load %arg27[%c0_10, %c0_11] : memref<8x1xf32, #tpu.memory_space<vmem>>, vector<8x1xf32>
    %c0_12 = arith.constant 0 : index
    %c0_13 = arith.constant 0 : index
    %20 = vector.load %arg26[%c0_12, %c0_13] : memref<8x1xf32, #tpu.memory_space<vmem>>, vector<8x1xf32>
    %21 = arith.subf %20, %18 : vector<8x1xf32>
    %22 = math.exp %21 : vector<8x1xf32>
    %23 = arith.mulf %19, %22 : vector<8x1xf32>
    %24 = vector.broadcast %18 : vector<8x1xf32> to vector<8x128xf32>
    %25 = arith.subf %13, %24 : vector<8x128xf32>
    %26 = math.exp %25 : vector<8x128xf32>
    %cst_14 = arith.constant dense<0.000000e+00> : vector<8xf32>
    %27 = vector.multi_reduction <add>, %26, %cst_14 [1] : vector<8x128xf32> to vector<8xf32>
    %28 = vector.shape_cast %27 : vector<8xf32> to vector<8x1xf32>
    %29 = arith.addf %23, %28 : vector<8x1xf32>
    %c0_15 = arith.constant 0 : index
    %c0_16 = arith.constant 0 : index
    %30 = vector.load %arg27[%c0_15, %c0_16] : memref<8x1xf32, #tpu.memory_space<vmem>>, vector<8x1xf32>
    tpu.vector_store %arg27[%c0_15, %c0_16], %29 {strides = array<i32>} : memref<8x1xf32, #tpu.memory_space<vmem>>, vector<8x1xf32>,
    %c0_17 = arith.constant 0 : index
    %c0_18 = arith.constant 0 : index
    %31 = vector.load %arg26[%c0_17, %c0_18] : memref<8x1xf32, #tpu.memory_space<vmem>>, vector<8x1xf32>
    tpu.vector_store %arg26[%c0_17, %c0_18], %18 {strides = array<i32>} : memref<8x1xf32, #tpu.memory_space<vmem>>, vector<8x1xf32>,
    %c0_i32_19 = arith.constant 0 : i32
    %32 = arith.cmpi eq, %arg0, %c0_i32_19 : i32
    %33 = arith.extui %32 : i1 to i32
    %c0_i32_20 = arith.constant 0 : i32
    %34 = arith.cmpi ne, %33, %c0_i32_20 : i32
    scf.if %34 {
      %c0_21 = arith.constant 0 : index
      %c0_22 = arith.constant 0 : index
      %35 = vector.load %arg26[%c0_21, %c0_22] : memref<8x1xf32, #tpu.memory_space<vmem>>, vector<8x1xf32>
      %c0_23 = arith.constant 0 : index
      %c0_24 = arith.constant 0 : index
      %36 = vector.load %arg27[%c0_23, %c0_24] : memref<8x1xf32, #tpu.memory_space<vmem>>, vector<8x1xf32>
      %37 = math.log %36 : vector<8x1xf32>
      %38 = arith.addf %35, %37 : vector<8x1xf32>
      %c0_25 = arith.constant 0 : index
      %c105 = arith.constant 105 : index
      %39 = vector.load %arg24[%c0_25, %c105] : memref<8x128xf32, #tpu.memory_space<vmem>>, vector<8x1xf32>
      tpu.vector_store %arg24[%c0_25, %c105], %38 {strides = array<i32>} : memref<8x128xf32, #tpu.memory_space<vmem>>, vector<8x1xf32>,
    } else {
    }
    return
  }
  func.func @transform_0(%arg0: i32) -> (i32, i32) {
    %c0_i32 = arith.constant 0 : i32
    %c0_i32_0 = arith.constant 0 : i32
    %c0_i32_1 = arith.constant 0 : i32
    return %c0_i32, %c0_i32_0 : i32, i32
  }
  func.func @transform_1(%arg0: i32) -> (i32, i32) {
    %c0_i32 = arith.constant 0 : i32
    %c0_i32_0 = arith.constant 0 : i32
    %c0_i32_1 = arith.constant 0 : i32
    return %c0_i32, %c0_i32_0 : i32, i32
  }
  func.func @transform_2(%arg0: i32) -> (i32, i32) {
    %c0_i32 = arith.constant 0 : i32
    %c0_i32_0 = arith.constant 0 : i32
    %c0_i32_1 = arith.constant 0 : i32
    return %c0_i32, %c0_i32_0 : i32, i32
  }
  func.func @transform_3(%arg0: i32) -> (i32, i32, i32) {
    %c0_i32 = arith.constant 0 : i32
    %c0_i32_0 = arith.constant 0 : i32
    %c0_i32_1 = arith.constant 0 : i32
    %c0_i32_2 = arith.constant 0 : i32
    return %c0_i32, %c0_i32_0, %c0_i32_1 : i32, i32, i32
  }
  func.func @transform_4(%arg0: i32) -> (i32, i32, i32) {
    %c0_i32 = arith.constant 0 : i32
    %c0_i32_0 = arith.constant 0 : i32
    %c0_i32_1 = arith.constant 0 : i32
    %c0_i32_2 = arith.constant 0 : i32
    return %c0_i32, %c0_i32_0, %c0_i32_1 : i32, i32, i32
  }
  func.func @transform_5(%arg0: i32) -> (i32, i32, i32) {
    %c0_i32 = arith.constant 0 : i32
    %c0_i32_0 = arith.constant 0 : i32
    %c0_i32_1 = arith.constant 0 : i32
    %c0_i32_2 = arith.constant 0 : i32
    return %c0_i32, %c0_i32_0, %c0_i32_1 : i32, i32, i32
  }
  func.func @transform_6(%arg0: i32) -> (i32, i32, i32) {
    %c0_i32 = arith.constant 0 : i32
    %c0_i32_0 = arith.constant 0 : i32
    %c0_i32_1 = arith.constant 0 : i32
    %c0_i32_2 = arith.constant 0 : i32
    return %c0_i32, %c0_i32_0, %c0_i32_1 : i32, i32, i32
  }
  func.func @transform_7(%arg0: i32) -> (i32, i32) {
    %c0_i32 = arith.constant 0 : i32
    %c0_i32_0 = arith.constant 0 : i32
    %c0_i32_1 = arith.constant 0 : i32
    return %c0_i32, %c0_i32_0 : i32, i32
  }
  func.func @transform_8(%arg0: i32) -> (i32, i32) {
    %c0_i32 = arith.constant 0 : i32
    %c0_i32_0 = arith.constant 0 : i32
    %c0_i32_1 = arith.constant 0 : i32
    return %c0_i32, %c0_i32_0 : i32, i32
  }
  func.func @transform_9(%arg0: i32) -> (i32, i32) {
    %c0_i32 = arith.constant 0 : i32
    %c0_i32_0 = arith.constant 0 : i32
    %c0_i32_1 = arith.constant 0 : i32
    return %c0_i32, %c0_i32_0 : i32, i32
  }
  func.func @transform_10(%arg0: i32) -> (i32, i32) {
    %c0_i32 = arith.constant 0 : i32
    %c0_i32_0 = arith.constant 0 : i32
    %c0_i32_1 = arith.constant 0 : i32
    return %c0_i32, %c0_i32_0 : i32, i32
  }
  func.func @transform_11(%arg0: i32) -> (i32, i32) {
    %c0_i32 = arith.constant 0 : i32
    %c0_i32_0 = arith.constant 0 : i32
    %c0_i32_1 = arith.constant 0 : i32
    return %c0_i32, %c0_i32_0 : i32, i32
  }
  func.func @transform_12(%arg0: i32) -> (i32, i32) {
    %c0_i32 = arith.constant 0 : i32
    %c0_i32_0 = arith.constant 0 : i32
    %c0_i32_1 = arith.constant 0 : i32
    return %c0_i32, %c0_i32_0 : i32, i32
  }
  func.func @transform_13(%arg0: i32) -> (i32, i32) {
    %c0_i32 = arith.constant 0 : i32
    %c0_i32_0 = arith.constant 0 : i32
    %c0_i32_1 = arith.constant 0 : i32
    return %c0_i32, %c0_i32_0 : i32, i32
  }
  func.func @transform_14(%arg0: i32) -> (i32, i32) {
    %c0_i32 = arith.constant 0 : i32
    %c0_i32_0 = arith.constant 0 : i32
    %c0_i32_1 = arith.constant 0 : i32
    return %c0_i32, %c0_i32_0 : i32, i32
  }
  func.func @transform_15(%arg0: i32) -> (i32, i32) {
    %c0_i32 = arith.constant 0 : i32
    %c0_i32_0 = arith.constant 0 : i32
    %c0_i32_1 = arith.constant 0 : i32
    return %c0_i32, %c0_i32_0 : i32, i32
  }
  func.func @transform_16(%arg0: i32) -> (i32, i32) {
    %c0_i32 = arith.constant 0 : i32
    %c0_i32_0 = arith.constant 0 : i32
    %c0_i32_1 = arith.constant 0 : i32
    return %c0_i32, %c0_i32_0 : i32, i32
  }
  func.func @transform_17(%arg0: i32) -> (i32, i32) {
    %c0_i32 = arith.constant 0 : i32
    %c0_i32_0 = arith.constant 0 : i32
    %c0_i32_1 = arith.constant 0 : i32
    return %c0_i32, %c0_i32_0 : i32, i32
  }
  func.func @transform_18(%arg0: i32) -> (i32, i32) {
    %c0_i32 = arith.constant 0 : i32
    %c0_i32_0 = arith.constant 0 : i32
    %c0_i32_1 = arith.constant 0 : i32
    return %c0_i32, %c0_i32_0 : i32, i32
  }
  func.func @transform_19(%arg0: i32) -> (i32, i32) {
    %c0_i32 = arith.constant 0 : i32
    %c0_i32_0 = arith.constant 0 : i32
    %c0_i32_1 = arith.constant 0 : i32
    return %c0_i32, %c0_i32_0 : i32, i32
  }
  func.func @transform_20(%arg0: i32) -> (i32, i32) {
    %c0_i32 = arith.constant 0 : i32
    %c0_i32_0 = arith.constant 0 : i32
    %c0_i32_1 = arith.constant 0 : i32
    return %c0_i32, %c0_i32_0 : i32, i32
  }
  func.func @transform_21(%arg0: i32) -> (i32, i32) {
    %c0_i32 = arith.constant 0 : i32
    %c0_i32_0 = arith.constant 0 : i32
    return %c0_i32, %arg0 : i32, i32
  }
  func.func @transform_22(%arg0: i32) -> (i32, i32) {
    %c0_i32 = arith.constant 0 : i32
    %c0_i32_0 = arith.constant 0 : i32
    return %c0_i32, %arg0 : i32, i32
  }
  func.func @transform_23(%arg0: i32) -> (i32, i32) {
    %c0_i32 = arith.constant 0 : i32
    %c0_i32_0 = arith.constant 0 : i32
    %c0_i32_1 = arith.constant 0 : i32
    return %c0_i32, %c0_i32_0 : i32, i32
  }
}

</mosaic_0001>

<llo_original>
// kernel: tpu_custom_call.1
$region0: #{tpu_custom_call.1}
  #allocation0 [shape = 'u32[]', space=smem, size = 0x4, offset = 0x4, fixed_abs, tag = 'smem constant byte address 0x4 - core index']
  #allocation1 [shape = 'u32[72,128]{1,0:T(1,128)}', space=vmem, size = 0x9000, scoped, tag = 'internal scratch']
  #allocation2 [shape = 'bf16[8,96]{1,0:T(8,128)(2,1)}', space=vmem, size = 0x800, scoped, tag = 'scratch operand']
  #allocation3 [shape = 'f32[8,1]{1,0:T(8,128)}', space=vmem, size = 0x1000, scoped, tag = 'scratch operand']
  #allocation4 [shape = 'f32[8,1]{1,0:T(8,128)}', space=vmem, size = 0x1000, scoped, tag = 'scratch operand']
  #allocation5 [shape = 'f32[1,1]{1,0:T(1,128)S(1)}', space=vmem, size = 0x200, scoped, tag = 'scoped memory for tpu_custom_call.1']
  %s0 = inlined_call_operand.hbm [shape: f32[8,16], index: 0, kind: input, shape index: {}]
  %s1 = inlined_call_operand.hbm [shape: f32[8,32], index: 1, kind: input, shape index: {}]
  %s2 = inlined_call_operand.hbm [shape: f32[8,32], index: 2, kind: input, shape index: {}]
  %s3 = inlined_call_operand.hbm [shape: bf16[8,8,32], index: 3, kind: input, shape index: {}]
  %s4 = inlined_call_operand.hbm [shape: f32[8,8,32], index: 4, kind: input, shape index: {}]
  %s5 = inlined_call_operand.hbm [shape: bf16[8,4,32], index: 5, kind: input, shape index: {}]
  %s6 = inlined_call_operand.hbm [shape: f32[8,4,32], index: 6, kind: input, shape index: {}]
  %s7 = inlined_call_operand.vmem [shape: f32[8,8], index: 7, kind: input, shape index: {}]
  %s8 = inlined_call_operand.hbm [shape: bf16[16,16], index: 8, kind: input, shape index: {}]
  %s9 = inlined_call_operand.hbm [shape: f32[1,16], index: 9, kind: input, shape index: {}]
  %s10 = inlined_call_operand.hbm [shape: bf16[16,128], index: 10, kind: input, shape index: {}]
  %s11 = inlined_call_operand.hbm [shape: bf16[32,128], index: 11, kind: input, shape index: {}]
  %s12 = inlined_call_operand.vmem [shape: f32[1,128], index: 12, kind: input, shape index: {}]
  %s13 = inlined_call_operand.hbm [shape: bf16[32,64], index: 13, kind: input, shape index: {}]
  %s14 = inlined_call_operand.hbm [shape: bf16[32,64], index: 14, kind: input, shape index: {}]
  %s15 = inlined_call_operand.vmem [shape: f32[1,32], index: 15, kind: input, shape index: {}]
  %s16 = inlined_call_operand.vmem [shape: f32[1,32], index: 16, kind: input, shape index: {}]
  %s17 = inlined_call_operand.vmem [shape: f32[1,32], index: 17, kind: input, shape index: {}]
  %s18 = inlined_call_operand.vmem [shape: f32[1,16], index: 18, kind: input, shape index: {}]
  %s19 = inlined_call_operand.vmem [shape: f32[4,32], index: 19, kind: input, shape index: {}]
  %s20 = inlined_call_operand.<no memory space> [shape: f32[1,1], index: 20, kind: input, shape index: {}]
  %s21 = inlined_call_operand.hbm [shape: bf16[96,128], index: 21, kind: input, shape index: {}]
  %s22 = inlined_call_operand.hbm [shape: f32[8,128], index: 22, kind: output, shape index: {0}]
  %s23 = inlined_call_operand.hbm [shape: f32[8,128], index: 23, kind: output, shape index: {1}]
  %24 = xla_tuple %s22, %s23
  %s25 = sld [smem:[#allocation0]]
  $region170: #{tpu_custom_call.1} parent=0
    _
  %s27 = ssub.s32 1, %s25
  %s28 = scalar_select 0, %s27, %s25
  %v29 = vstv %s20
  %30 = vst [vmem:[#allocation5] sm:$0x1] %v29
  $region1: #{tpu_custom_call.1} parent=0
    #allocation6 [shape = 'u8[4096]{0}', space=vmem, size = 0x1000, scoped, tag = 'input window, operand 0, single buffered']
    #allocation7 [shape = 's32[1]{0}', space=sflag, size = 0x4, scoped, tag = 'scoped memory for tpu_custom_call.1']
    #allocation8 [shape = 's32[1]{0}', space=sflag, size = 0x4, scoped, tag = 'scoped memory for tpu_custom_call.1']
    #allocation9 [shape = 'u8[4096]{0}', space=vmem, size = 0x1000, scoped, tag = 'input window, operand 1, single buffered']
    #allocation10 [shape = 's32[1]{0}', space=sflag, size = 0x4, scoped, tag = 'scoped memory for tpu_custom_call.1']
    #allocation11 [shape = 'u8[4096]{0}', space=vmem, size = 0x1000, scoped, tag = 'input window, operand 2, single buffered']
    #allocation12 [shape = 'u8[16384]{0}', space=vmem, size = 0x4000, scoped, tag = 'input window, operand 3, single buffered']
    #allocation13 [shape = 's32[1]{0}', space=sflag, size = 0x4, scoped, tag = 'scoped memory for tpu_custom_call.1']
    #allocation14 [shape = 'u8[32768]{0}', space=vmem, size = 0x8000, scoped, tag = 'input window, operand 4, single buffered']
    #allocation15 [shape = 'u8[8192]{0}', space=vmem, size = 0x2000, scoped, tag = 'input window, operand 5, single buffered']
    #allocation16 [shape = 's32[1]{0}', space=sflag, size = 0x4, scoped, tag = 'scoped memory for tpu_custom_call.1']
    #allocation17 [shape = 'u8[16384]{0}', space=vmem, size = 0x4000, scoped, tag = 'input window, operand 6, single buffered']
    #allocation18 [shape = 'u8[4096]{0}', space=vmem, size = 0x1000, scoped, tag = 'input window, operand 8, single buffered']
    #allocation19 [shape = 's32[1]{0}', space=sflag, size = 0x4, scoped, tag = 'scoped memory for tpu_custom_call.1']
    #allocation20 [shape = 'u8[512]{0}', space=vmem, size = 0x400, scoped, tag = 'input window, operand 9, single buffered']
    #allocation21 [shape = 'u8[4096]{0}', space=vmem, size = 0x1000, scoped, tag = 'input window, operand 10, single buffered']
    #allocation22 [shape = 's32[1]{0}', space=sflag, size = 0x4, scoped, tag = 'scoped memory for tpu_custom_call.1']
    #allocation23 [shape = 'u8[8192]{0}', space=vmem, size = 0x2000, scoped, tag = 'input window, operand 11, single buffered']
    #allocation24 [shape = 'u8[8192]{0}', space=vmem, size = 0x2000, scoped, tag = 'input window, operand 13, single buffered']
    #allocation25 [shape = 's32[1]{0}', space=sflag, size = 0x4, scoped, tag = 'scoped memory for tpu_custom_call.1']
    #allocation26 [shape = 'u8[8192]{0}', space=vmem, size = 0x2000, scoped, tag = 'input window, operand 14, single buffered']
    #allocation27 [shape = 'u8[24576]{0}', space=vmem, size = 0x6000, scoped, tag = 'input window, operand 21, single buffered']
    #allocation28 [shape = 's32[1]{0}', space=sflag, size = 0x4, scoped, tag = 'scoped memory for tpu_custom_call.1']
    #allocation29 [shape = 'u8[4096]{0}', space=vmem, size = 0x1000, scoped, tag = 'output window, operand 0, single buffered']
    #allocation30 [shape = 'u8[4096]{0}', space=vmem, size = 0x1000, scoped, tag = 'output window, operand 1, single buffered']
    #allocation31 [shape = 's32[1]{0}', space=sflag, size = 0x4, scoped, tag = 'scoped memory for tpu_custom_call.1']
    %31 = vsyncpa [#allocation7], 0
    %32 = vsyncpa [#allocation10], 0
    %33 = vsyncpa [#allocation13], 0
    %34 = vsyncpa [#allocation16], 0
    %35 = vsyncpa [#allocation19], 0
    %36 = vsyncpa [#allocation22], 0
    %37 = vsyncpa [#allocation25], 0
    %38 = vsyncpa [#allocation28], 0
    %39 = vsyncpa [#allocation8], 0
    %40 = vsyncpa [#allocation31], 0
    // Predicated region
    $region2: #{tpu_custom_call.1} parent=1 // pred_check
      _
    $region3: #{tpu_custom_call.1} parent=1 // pred_check_branch
      %42 = sbr.rel (0) target = $region5
    $region4: #{tpu_custom_call.1} parent=1 // pred_region
      %44 = vsyncadd [#allocation7], 0
      %s46 = sshll.u32 %s0, 4
      %s47 = int_to_ptr.hbm [resolvable:$true] %s46
      %s48 = sshll.u32 [#allocation6], 4
      %s49 = int_to_ptr.vmem [resolvable:$true] %s48
      %51 = dma.hbm_to_vmem [thread:$0]  %s47, 128, %s49, [#allocation7]
    $region5: #{tpu_custom_call.1} parent=1 // pred_fallthru
      _
    // Predicated region
    $region6: #{tpu_custom_call.1} parent=1 // pred_check
      _
    $region7: #{tpu_custom_call.1} parent=1 // pred_check_branch
      %53 = sbr.rel (0) target = $region9
    $region8: #{tpu_custom_call.1} parent=1 // pred_region
      %55 = vsyncadd [#allocation10], 0
      %s57 = sshll.u32 %s1, 4
      %s58 = int_to_ptr.hbm [resolvable:$true] %s57
      %s59 = sshll.u32 [#allocation9], 4
      %s60 = int_to_ptr.vmem [resolvable:$true] %s59
      %62 = dma.hbm_to_vmem [thread:$0]  %s58, 128, %s60, [#allocation10]
    $region9: #{tpu_custom_call.1} parent=1 // pred_fallthru
      _
    // Predicated region
    $region10: #{tpu_custom_call.1} parent=1 // pred_check
      _
    $region11: #{tpu_custom_call.1} parent=1 // pred_check_branch
      %64 = sbr.rel (0) target = $region13
    $region12: #{tpu_custom_call.1} parent=1 // pred_region
      %66 = vsyncadd [#allocation10], 0
      %s68 = sshll.u32 %s2, 4
      %s69 = int_to_ptr.hbm [resolvable:$true] %s68
      %s70 = sshll.u32 [#allocation11], 4
      %s71 = int_to_ptr.vmem [resolvable:$true] %s70
      %73 = dma.hbm_to_vmem [thread:$0]  %s69, 128, %s71, [#allocation10]
    $region13: #{tpu_custom_call.1} parent=1 // pred_fallthru
      _
    // Predicated region
    $region14: #{tpu_custom_call.1} parent=1 // pred_check
      _
    $region15: #{tpu_custom_call.1} parent=1 // pred_check_branch
      %75 = sbr.rel (0) target = $region17
    $region16: #{tpu_custom_call.1} parent=1 // pred_region
      %77 = vsyncadd [#allocation13], 0
      %s78 = sshll.u32 %s3, 4
      %s79 = int_to_ptr.hbm [resolvable:$true] %s78
      %s80 = sshll.u32 [#allocation12], 4
      %s81 = int_to_ptr.vmem [resolvable:$true] %s80
      %86 = dma.hbm_to_vmem [thread:$0]  %s79, 512, %s81, [#allocation13], 64, 64, 4
    $region17: #{tpu_custom_call.1} parent=1 // pred_fallthru
      _
    // Predicated region
    $region18: #{tpu_custom_call.1} parent=1 // pred_check
      _
    $region19: #{tpu_custom_call.1} parent=1 // pred_check_branch
      %88 = sbr.rel (0) target = $region21
    $region20: #{tpu_custom_call.1} parent=1 // pred_region
      %90 = vsyncadd [#allocation13], 0
      %s91 = sshll.u32 %s4, 4
      %s92 = int_to_ptr.hbm [resolvable:$true] %s91
      %s93 = sshll.u32 [#allocation14], 4
      %s94 = int_to_ptr.vmem [resolvable:$true] %s93
      %99 = dma.hbm_to_vmem [thread:$0]  %s92, 1024, %s94, [#allocation13], 128, 128, 8
    $region21: #{tpu_custom_call.1} parent=1 // pred_fallthru
      _
    // Predicated region
    $region22: #{tpu_custom_call.1} parent=1 // pred_check
      _
    $region23: #{tpu_custom_call.1} parent=1 // pred_check_branch
      %101 = sbr.rel (0) target = $region25
    $region24: #{tpu_custom_call.1} parent=1 // pred_region
      %103 = vsyncadd [#allocation16], 0
      %s104 = sshll.u32 %s5, 4
      %s105 = int_to_ptr.hbm [resolvable:$true] %s104
      %s106 = sshll.u32 [#allocation15], 4
      %s107 = int_to_ptr.vmem [resolvable:$true] %s106
      %112 = dma.hbm_to_vmem [thread:$0]  %s105, 256, %s107, [#allocation16], 32, 32, 2
    $region25: #{tpu_custom_call.1} parent=1 // pred_fallthru
      _
    // Predicated region
    $region26: #{tpu_custom_call.1} parent=1 // pred_check
      _
    $region27: #{tpu_custom_call.1} parent=1 // pred_check_branch
      %114 = sbr.rel (0) target = $region29
    $region28: #{tpu_custom_call.1} parent=1 // pred_region
      %116 = vsyncadd [#allocation16], 0
      %s117 = sshll.u32 %s6, 4
      %s118 = int_to_ptr.hbm [resolvable:$true] %s117
      %s119 = sshll.u32 [#allocation17], 4
      %s120 = int_to_ptr.vmem [resolvable:$true] %s119
      %125 = dma.hbm_to_vmem [thread:$0]  %s118, 512, %s120, [#allocation16], 64, 64, 4
    $region29: #{tpu_custom_call.1} parent=1 // pred_fallthru
      _
    // Predicated region
    $region30: #{tpu_custom_call.1} parent=1 // pred_check
      _
    $region31: #{tpu_custom_call.1} parent=1 // pred_check_branch
      %127 = sbr.rel (0) target = $region33
    $region32: #{tpu_custom_call.1} parent=1 // pred_region
      _
    $region33: #{tpu_custom_call.1} parent=1 // pred_fallthru
      _
    // Predicated region
    $region34: #{tpu_custom_call.1} parent=1 // pred_check
      _
    $region35: #{tpu_custom_call.1} parent=1 // pred_check_branch
      %129 = sbr.rel (0) target = $region37
    $region36: #{tpu_custom_call.1} parent=1 // pred_region
      %131 = vsyncadd [#allocation19], 0
      %s132 = sshll.u32 %s8, 4
      %s133 = int_to_ptr.hbm [resolvable:$true] %s132
      %s134 = sshll.u32 [#allocation18], 4
      %s135 = int_to_ptr.vmem [resolvable:$true] %s134
      %140 = dma.hbm_to_vmem [thread:$0]  %s133, 128, %s135, [#allocation19], 64, 64, 4
    $region37: #{tpu_custom_call.1} parent=1 // pred_fallthru
      _
    // Predicated region
    $region38: #{tpu_custom_call.1} parent=1 // pred_check
      _
    $region39: #{tpu_custom_call.1} parent=1 // pred_check_branch
      %142 = sbr.rel (0) target = $region41
    $region40: #{tpu_custom_call.1} parent=1 // pred_region
      %144 = vsyncadd [#allocation19], 0
      %s146 = sshll.u32 %s9, 4
      %s147 = int_to_ptr.hbm [resolvable:$true] %s146
      %s148 = sshll.u32 [#allocation20], 4
      %s149 = int_to_ptr.vmem [resolvable:$true] %s148
      %151 = dma.hbm_to_vmem [thread:$0]  %s147, 16, %s149, [#allocation19]
    $region41: #{tpu_custom_call.1} parent=1 // pred_fallthru
      _
    // Predicated region
    $region42: #{tpu_custom_call.1} parent=1 // pred_check
      _
    $region43: #{tpu_custom_call.1} parent=1 // pred_check_branch
      %153 = sbr.rel (0) target = $region45
    $region44: #{tpu_custom_call.1} parent=1 // pred_region
      %155 = vsyncadd [#allocation22], 0
      %s156 = sshll.u32 %s10, 4
      %s157 = int_to_ptr.hbm [resolvable:$true] %s156
      %s158 = sshll.u32 [#allocation21], 4
      %s159 = int_to_ptr.vmem [resolvable:$true] %s158
      %164 = dma.hbm_to_vmem [thread:$0]  %s157, 128, %s159, [#allocation22], 64, 64, 4
    $region45: #{tpu_custom_call.1} parent=1 // pred_fallthru
      _
    // Predicated region
    $region46: #{tpu_custom_call.1} parent=1 // pred_check
      _
    $region47: #{tpu_custom_call.1} parent=1 // pred_check_branch
      %166 = sbr.rel (0) target = $region49
    $region48: #{tpu_custom_call.1} parent=1 // pred_region
      %168 = vsyncadd [#allocation22], 0
      %s169 = sshll.u32 %s11, 4
      %s170 = int_to_ptr.hbm [resolvable:$true] %s169
      %s171 = sshll.u32 [#allocation23], 4
      %s172 = int_to_ptr.vmem [resolvable:$true] %s171
      %177 = dma.hbm_to_vmem [thread:$0]  %s170, 256, %s172, [#allocation22], 64, 64, 4
    $region49: #{tpu_custom_call.1} parent=1 // pred_fallthru
      _
    // Predicated region
    $region50: #{tpu_custom_call.1} parent=1 // pred_check
      _
    $region51: #{tpu_custom_call.1} parent=1 // pred_check_branch
      %179 = sbr.rel (0) target = $region53
    $region52: #{tpu_custom_call.1} parent=1 // pred_region
      _
    $region53: #{tpu_custom_call.1} parent=1 // pred_fallthru
      _
    // Predicated region
    $region54: #{tpu_custom_call.1} parent=1 // pred_check
      _
    $region55: #{tpu_custom_call.1} parent=1 // pred_check_branch
      %181 = sbr.rel (0) target = $region57
    $region56: #{tpu_custom_call.1} parent=1 // pred_region
      %183 = vsyncadd [#allocation25], 0
      %s184 = sshll.u32 %s13, 4
      %s185 = int_to_ptr.hbm [resolvable:$true] %s184
      %s186 = sshll.u32 [#allocation24], 4
      %s187 = int_to_ptr.vmem [resolvable:$true] %s186
      %192 = dma.hbm_to_vmem [thread:$0]  %s185, 256, %s187, [#allocation25], 64, 64, 4
    $region57: #{tpu_custom_call.1} parent=1 // pred_fallthru
      _
    // Predicated region
    $region58: #{tpu_custom_call.1} parent=1 // pred_check
      _
    $region59: #{tpu_custom_call.1} parent=1 // pred_check_branch
      %194 = sbr.rel (0) target = $region61
    $region60: #{tpu_custom_call.1} parent=1 // pred_region
      %196 = vsyncadd [#allocation25], 0
      %s197 = sshll.u32 %s14, 4
      %s198 = int_to_ptr.hbm [resolvable:$true] %s197
      %s199 = sshll.u32 [#allocation26], 4
      %s200 = int_to_ptr.vmem [resolvable:$true] %s199
      %205 = dma.hbm_to_vmem [thread:$0]  %s198, 256, %s200, [#allocation25], 64, 64, 4
    $region61: #{tpu_custom_call.1} parent=1 // pred_fallthru
      _
    // Predicated region
    $region62: #{tpu_custom_call.1} parent=1 // pred_check
      _
    $region63: #{tpu_custom_call.1} parent=1 // pred_check_branch
      %207 = sbr.rel (0) target = $region65
    $region64: #{tpu_custom_call.1} parent=1 // pred_region
      _
    $region65: #{tpu_custom_call.1} parent=1 // pred_fallthru
      _
    // Predicated region
    $region66: #{tpu_custom_call.1} parent=1 // pred_check
      _
    $region67: #{tpu_custom_call.1} parent=1 // pred_check_branch
      %209 = sbr.rel (0) target = $region69
    $region68: #{tpu_custom_call.1} parent=1 // pred_region
      _
    $region69: #{tpu_custom_call.1} parent=1 // pred_fallthru
      _
    // Predicated region
    $region70: #{tpu_custom_call.1} parent=1 // pred_check
      _
    $region71: #{tpu_custom_call.1} parent=1 // pred_check_branch
      %211 = sbr.rel (0) target = $region73
    $region72: #{tpu_custom_call.1} parent=1 // pred_region
      _
    $region73: #{tpu_custom_call.1} parent=1 // pred_fallthru
      _
    // Predicated region
    $region74: #{tpu_custom_call.1} parent=1 // pred_check
      _
    $region75: #{tpu_custom_call.1} parent=1 // pred_check_branch
      %213 = sbr.rel (0) target = $region77
    $region76: #{tpu_custom_call.1} parent=1 // pred_region
      _
    $region77: #{tpu_custom_call.1} parent=1 // pred_fallthru
      _
    // Predicated region
    $region78: #{tpu_custom_call.1} parent=1 // pred_check
      _
    $region79: #{tpu_custom_call.1} parent=1 // pred_check_branch
      %215 = sbr.rel (0) target = $region81
    $region80: #{tpu_custom_call.1} parent=1 // pred_region
      _
    $region81: #{tpu_custom_call.1} parent=1 // pred_fallthru
      _
    // Predicated region
    $region82: #{tpu_custom_call.1} parent=1 // pred_check
      _
    $region83: #{tpu_custom_call.1} parent=1 // pred_check_branch
      %217 = sbr.rel (0) target = $region85
    $region84: #{tpu_custom_call.1} parent=1 // pred_region
      _
    $region85: #{tpu_custom_call.1} parent=1 // pred_fallthru
      _
    // Predicated region
    $region86: #{tpu_custom_call.1} parent=1 // pred_check
      _
    $region87: #{tpu_custom_call.1} parent=1 // pred_check_branch
      %219 = sbr.rel (0) target = $region89
    $region88: #{tpu_custom_call.1} parent=1 // pred_region
      %221 = vsyncadd [#allocation28], 0
      %s222 = sshll.u32 %s21, 4
      %s223 = int_to_ptr.hbm [resolvable:$true] %s222
      %s224 = sshll.u32 [#allocation27], 4
      %s225 = int_to_ptr.vmem [resolvable:$true] %s224
      %230 = dma.hbm_to_vmem [thread:$0]  %s223, 768, %s225, [#allocation28], 64, 64, 4
    $region89: #{tpu_custom_call.1} parent=1 // pred_fallthru
      _
    // Predicated region
    $region90: #{tpu_custom_call.1} parent=1 // pred_check
      _
    $region91: #{tpu_custom_call.1} parent=1 // pred_check_branch
      %232 = sbr.rel (0) target = $region93
    $region92: #{tpu_custom_call.1} parent=1 // pred_region
      %234 = dma.done [#allocation7], 128
    $region93: #{tpu_custom_call.1} parent=1 // pred_fallthru
      _
    // Predicated region
    $region94: #{tpu_custom_call.1} parent=1 // pred_check
      _
    $region95: #{tpu_custom_call.1} parent=1 // pred_check_branch
      %236 = sbr.rel (0) target = $region97
    $region96: #{tpu_custom_call.1} parent=1 // pred_region
      %238 = dma.done [#allocation10], 128
    $region97: #{tpu_custom_call.1} parent=1 // pred_fallthru
      _
    // Predicated region
    $region98: #{tpu_custom_call.1} parent=1 // pred_check
      _
    $region99: #{tpu_custom_call.1} parent=1 // pred_check_branch
      %240 = sbr.rel (0) target = $region101
    $region100: #{tpu_custom_call.1} parent=1 // pred_region
      %242 = dma.done [#allocation10], 128
    $region101: #{tpu_custom_call.1} parent=1 // pred_fallthru
      _
    // Predicated region
    $region102: #{tpu_custom_call.1} parent=1 // pred_check
      _
    $region103: #{tpu_custom_call.1} parent=1 // pred_check_branch
      %244 = sbr.rel (0) target = $region105
    $region104: #{tpu_custom_call.1} parent=1 // pred_region
      %246 = dma.done [#allocation13], 512
    $region105: #{tpu_custom_call.1} parent=1 // pred_fallthru
      _
    // Predicated region
    $region106: #{tpu_custom_call.1} parent=1 // pred_check
      _
    $region107: #{tpu_custom_call.1} parent=1 // pred_check_branch
      %248 = sbr.rel (0) target = $region109
    $region108: #{tpu_custom_call.1} parent=1 // pred_region
      %250 = dma.done [#allocation13], 1024
    $region109: #{tpu_custom_call.1} parent=1 // pred_fallthru
      _
    // Predicated region
    $region110: #{tpu_custom_call.1} parent=1 // pred_check
      _
    $region111: #{tpu_custom_call.1} parent=1 // pred_check_branch
      %252 = sbr.rel (0) target = $region113
    $region112: #{tpu_custom_call.1} parent=1 // pred_region
      %254 = dma.done [#allocation16], 256
    $region113: #{tpu_custom_call.1} parent=1 // pred_fallthru
      _
    // Predicated region
    $region114: #{tpu_custom_call.1} parent=1 // pred_check
      _
    $region115: #{tpu_custom_call.1} parent=1 // pred_check_branch
      %256 = sbr.rel (0) target = $region117
    $region116: #{tpu_custom_call.1} parent=1 // pred_region
      %258 = dma.done [#allocation16], 512
    $region117: #{tpu_custom_call.1} parent=1 // pred_fallthru
      _
    // Predicated region
    $region118: #{tpu_custom_call.1} parent=1 // pred_check
      _
    $region119: #{tpu_custom_call.1} parent=1 // pred_check_branch
      %260 = sbr.rel (0) target = $region121
    $region120: #{tpu_custom_call.1} parent=1 // pred_region
      %262 = dma.done [#allocation19], 128
    $region121: #{tpu_custom_call.1} parent=1 // pred_fallthru
      _
    // Predicated region
    $region122: #{tpu_custom_call.1} parent=1 // pred_check
      _
    $region123: #{tpu_custom_call.1} parent=1 // pred_check_branch
      %264 = sbr.rel (0) target = $region125
    $region124: #{tpu_custom_call.1} parent=1 // pred_region
      %266 = dma.done [#allocation19], 16
    $region125: #{tpu_custom_call.1} parent=1 // pred_fallthru
      _
    // Predicated region
    $region126: #{tpu_custom_call.1} parent=1 // pred_check
      _
    $region127: #{tpu_custom_call.1} parent=1 // pred_check_branch
      %268 = sbr.rel (0) target = $region129
    $region128: #{tpu_custom_call.1} parent=1 // pred_region
      %270 = dma.done [#allocation22], 128
    $region129: #{tpu_custom_call.1} parent=1 // pred_fallthru
      _
    // Predicated region
    $region130: #{tpu_custom_call.1} parent=1 // pred_check
      _
    $region131: #{tpu_custom_call.1} parent=1 // pred_check_branch
      %272 = sbr.rel (0) target = $region133
    $region132: #{tpu_custom_call.1} parent=1 // pred_region
      %274 = dma.done [#allocation22], 256
    $region133: #{tpu_custom_call.1} parent=1 // pred_fallthru
      _
    // Predicated region
    $region134: #{tpu_custom_call.1} parent=1 // pred_check
      _
    $region135: #{tpu_custom_call.1} parent=1 // pred_check_branch
      %276 = sbr.rel (0) target = $region137
    $region136: #{tpu_custom_call.1} parent=1 // pred_region
      %278 = dma.done [#allocation25], 256
    $region137: #{tpu_custom_call.1} parent=1 // pred_fallthru
      _
    // Predicated region
    $region138: #{tpu_custom_call.1} parent=1 // pred_check
      _
    $region139: #{tpu_custom_call.1} parent=1 // pred_check_branch
      %280 = sbr.rel (0) target = $region141
    $region140: #{tpu_custom_call.1} parent=1 // pred_region
      %282 = dma.done [#allocation25], 256
    $region141: #{tpu_custom_call.1} parent=1 // pred_fallthru
      _
    // Predicated region
    $region142: #{tpu_custom_call.1} parent=1 // pred_check
      _
    $region143: #{tpu_custom_call.1} parent=1 // pred_check_branch
      %284 = sbr.rel (0) target = $region145
    $region144: #{tpu_custom_call.1} parent=1 // pred_region
      %286 = dma.done [#allocation28], 768
    $region145: #{tpu_custom_call.1} parent=1 // pred_fallthru
      _
    %p288 = scmp.eq.s32.totalorder 0, 0
    // Predicated region
    $region146: #{tpu_custom_call.1} parent=1 // pred_check
      %p289 = pneg %p288
    $region147: #{tpu_custom_call.1} parent=1 // pred_check_branch
      %291 = sbr.rel (%p289) target = $region149
    $region148: #{tpu_custom_call.1} parent=1 // pred_region
      %v292 = vld [vmem:[#allocation6] sm:$0xff]
      %v293 = vld [vmem:[#allocation9] sm:$0xff]
      %v294 = vld [vmem:[#allocation11] sm:$0xff]
      %v295 = vld [vmem:[#allocation18] sm:$0xf]
      %v296 = vld [vmem:[#allocation18 + $0x4] sm:$0xf]
      %v297 = vpack.c.bf16 %v292, %v292
      %v298 = vld [vmem:[#allocation20] sm:$0x1]
      %v300 = vperm.slane %v298, 0
      %v304 = vunpack.c.l.b16 %v295
      %v305 = vunpack.c.l.b16 %v296
      %v306 = vpack.c.b16 %v305, %v304
      %vm308 = vcmask 130048
      %v310 = vsel %vm308, %v297, 0
      %312 = vmatpush.bf16.msra.mxu0 0
      %313 = vmatpush.bf16.msra.mxu0 0
      %314 = vmatpush.bf16.msra.mxu0 0
      %315 = vmatpush.bf16.msra.mxu0 0
      %316 = vmatpush.bf16.msra.mxu0 0
      %317 = vmatpush.bf16.msra.mxu0 0
      %318 = vmatpush.bf16.msra.mxu0 0
      %319 = vmatpush.bf16.msra.mxu0 %v306
      %320 = vmatmul.bf16.gmra.mxu0 %v310
      %v321 = vpop.f32.mrf.mxu0
      %v322 = vadd.f32 %v300, %v321
      %v323 = vpop.f32.mrf.mxu0
      %324 = vdwg.mxu0
      %v325 = vld [vmem:[#allocation21] sm:$0xf]
      %v326 = vld [vmem:[#allocation21 + $0x4] sm:$0xf]
      %v327 = vpack.c.bf16 %v322, %v322
      %v328 = vld [vmem:[#allocation23] sm:$0xf]
      %v329 = vld [vmem:[#allocation23 + $0x4] sm:$0xf]
      %v330 = vld [vmem:[#allocation23 + $0x8] sm:$0xf]
      %v331 = vld [vmem:[#allocation23 + $0xc] sm:$0xf]
      %v332 = vpack.c.bf16 %v293, %v293
      %v337 = vunpack.c.l.b16 %v328
      %v338 = vunpack.c.l.b16 %v329
      %v339 = vunpack.c.l.b16 %v330
      %v340 = vunpack.c.l.b16 %v331
      %v341 = vpack.c.b16 %v338, %v337
      %v342 = vpack.c.b16 %v340, %v339
      %vm345 = vcmask 261120
      %v347 = vsel %vm345, %v332, 0
      %349 = vmatpush.bf16.msra.mxu0 0
      %350 = vmatpush.bf16.msra.mxu0 0
      %351 = vmatpush.bf16.msra.mxu0 0
      %352 = vmatpush.bf16.msra.mxu0 0
      %353 = vmatpush.bf16.msra.mxu0 0
      %354 = vmatpush.bf16.msra.mxu0 0
      %355 = vmatpush.bf16.msra.mxu0 %v342
      %356 = vmatpush.bf16.msra.mxu0 %v341
      %357 = vmatmul.bf16.gmra.mxu0 %v347
      %v358 = vpop.f32.mrf.mxu0
      %v359 = vadd.f32 0.0, %v358
      %v360 = vpop.f32.mrf.mxu0
      %361 = vdwg.mxu0
      %v364 = vunpack.c.l.b16 %v325
      %v365 = vunpack.c.l.b16 %v326
      %v366 = vpack.c.b16 %v365, %v364
      %v369 = vsel %vm308, %v327, 0
      %371 = vmatpush.bf16.msra.mxu0 0
      %372 = vmatpush.bf16.msra.mxu0 0
      %373 = vmatpush.bf16.msra.mxu0 0
      %374 = vmatpush.bf16.msra.mxu0 0
      %375 = vmatpush.bf16.msra.mxu0 0
      %376 = vmatpush.bf16.msra.mxu0 0
      %377 = vmatpush.bf16.msra.mxu0 0
      %378 = vmatpush.bf16.msra.mxu0 %v366
      %379 = vmatmul.bf16.gmra.mxu0 %v369
      %v380 = vpop.f32.mrf.mxu0
      %v381 = vadd.f32 %v359, %v380
      %v382 = vpop.f32.mrf.mxu0
      %383 = vdwg.mxu0
      %v384 = vld [vmem:[%s12] sm:$0x1]
      %v386 = vperm.slane %v384, 0
      %v388 = vadd.f32 %v381, %v386
      %v389 = vand.u32 2147483647, %v388
      %v390 = vsub.f32 0.0, %v389
      %v391 = vmul.f32 %v390, 1.442695
      %v392 = vpow.pop %v391
      %vm393 = vcmp.ge.f32.partialorder %v388, 0.0
      %v394 = vadd.f32 %v392, 1.0
      %v395 = vrcp.pop %v394
      %v396 = vmul.f32 %v394, %v395
      %v397 = vsub.f32 1.0, %v396
      %v398 = vmul.f32 %v395, %v397
      %v399 = vadd.f32 %v395, %v398
      %vm400 = vweird.f32 %v394
      %vm401 = vweird.f32 %v395
      %vm402 = vmor %vm400, %vm401
      %v403 = vsel %vm402, %v395, %v399
      %v404 = vand.u32 2147483647, %v394
      %vm405 = vcmp.eq.f32.partialorder %v404, 8.507059e+37
      %v406 = vand.u32 %v394, 2147483648
      %v407 = vor.u32 1.1754944e-38, %v406
      %v408 = vsel %vm405, %v407, %v403
      %v409 = vmul.f32 1.0, %v408
      %v410 = vmul.f32 %v392, %v408
      %v411 = vsel %vm393, %v409, %v410
      %v412 = vtanh.pop %v388
      %414 = vrot.lane.b32.xlu0 %v294, 32
      %v415 = vpop.permute.xlu0 %414
      %v417 = vmul.f32 %v411, %v415
      %419 = vrot.lane.b32.xlu0 %v412, 64
      %v420 = vpop.permute.xlu0 %419
      %v422 = vmul.f32 %v411, %v420
      %424 = vrot.lane.b32.xlu0 %v422, 32
      %v425 = vpop.permute.xlu0 %424
      %v427 = vadd.f32 %v417, %v425
      %v428 = vtanh.pop %v427
      %430 = vrot.lane.b32.xlu0 %v428, 64
      %v431 = vpop.permute.xlu0 %430
      %v433 = vmul.f32 %v411, %v431
      %v434 = vld [vmem:[#allocation24] sm:$0xf]
      %v435 = vld [vmem:[#allocation24 + $0x4] sm:$0xf]
      %v436 = vld [vmem:[#allocation24 + $0x8] sm:$0xf]
      %v437 = vld [vmem:[#allocation24 + $0xc] sm:$0xf]
      %v438 = vpack.c.bf16 %v433, %v433
      %v439 = vld [vmem:[#allocation26] sm:$0xf]
      %v440 = vld [vmem:[#allocation26 + $0x4] sm:$0xf]
      %v441 = vld [vmem:[#allocation26 + $0x8] sm:$0xf]
      %v442 = vld [vmem:[#allocation26 + $0xc] sm:$0xf]
      %v443 = vpack.c.bf16 %v427, %v427
      %445 = vrot.lane.b32.xlu0 %v443, 96
      %v446 = vpop.permute.xlu0 %445
      %v451 = vunpack.c.l.b16 %v439
      %v452 = vunpack.c.l.b16 %v440
      %v453 = vunpack.c.l.b16 %v441
      %v454 = vunpack.c.l.b16 %v442
      %v455 = vpack.c.b16 %v452, %v451
      %v456 = vpack.c.b16 %v454, %v453
      %v460 = vsel %vm345, %v446, 0
      %462 = vmatpush.bf16.msra.mxu0 0
      %463 = vmatpush.bf16.msra.mxu0 0
      %464 = vmatpush.bf16.msra.mxu0 0
      %465 = vmatpush.bf16.msra.mxu0 0
      %466 = vmatpush.bf16.msra.mxu0 0
      %467 = vmatpush.bf16.msra.mxu0 0
      %468 = vmatpush.bf16.msra.mxu0 %v456
      %469 = vmatpush.bf16.msra.mxu0 %v455
      %470 = vmatmul.bf16.gmra.mxu0 %v460
      %v471 = vpop.f32.mrf.mxu0
      %v472 = vadd.f32 0.0, %v471
      %v473 = vpop.f32.mrf.mxu0
      %474 = vdwg.mxu0
      %v476 = vunpack.c.l.b16 %v438
      %v477 = vpack.c.b16 %v476, %v476
      %478 = vrot.lane.b32.xlu0 %v477, 32
      %v479 = vpop.permute.xlu0 %478
      %v484 = vunpack.c.l.b16 %v434
      %v485 = vunpack.c.l.b16 %v435
      %v486 = vunpack.c.l.b16 %v436
      %v487 = vunpack.c.l.b16 %v437
      %v488 = vpack.c.b16 %v485, %v484
      %v489 = vpack.c.b16 %v487, %v486
      %v493 = vsel %vm345, %v479, 0
      %495 = vmatpush.bf16.msra.mxu0 0
      %496 = vmatpush.bf16.msra.mxu0 0
      %497 = vmatpush.bf16.msra.mxu0 0
      %498 = vmatpush.bf16.msra.mxu0 0
      %499 = vmatpush.bf16.msra.mxu0 0
      %500 = vmatpush.bf16.msra.mxu0 0
      %501 = vmatpush.bf16.msra.mxu0 %v489
      %502 = vmatpush.bf16.msra.mxu0 %v488
      %503 = vmatmul.bf16.gmra.mxu0 %v493
      %v504 = vpop.f32.mrf.mxu0
      %v505 = vadd.f32 %v472, %v504
      %v506 = vpop.f32.mrf.mxu0
      %507 = vdwg.mxu0
      %v508 = vld [vmem:[%s7] sm:$0xff]
      %v509 = vperm.slane %v508, 0
      %v510 = vlaneseq
      %v511 = vshrl.u32 %v510, 7
      %513 = vset.pattern.permute.xlu0 %v511
      %514 = vperm.xlu0 %513, %v509
      %v515 = vpop.permute.xlu0 %514
      %v516 = vperm.slane %v508, 1
      %v517 = vlaneseq
      %v518 = vshrl.u32 %v517, 7
      %520 = vset.pattern.permute.xlu0 %v518
      %521 = vperm.xlu0 %520, %v516
      %v522 = vpop.permute.xlu0 %521
      %v523 = vperm.slane %v508, 2
      %v524 = vlaneseq
      %v525 = vshrl.u32 %v524, 7
      %527 = vset.pattern.permute.xlu0 %v525
      %528 = vperm.xlu0 %527, %v523
      %v529 = vpop.permute.xlu0 %528
      %v530 = vperm.slane %v508, 3
      %v531 = vlaneseq
      %v532 = vshrl.u32 %v531, 7
      %534 = vset.pattern.permute.xlu0 %v532
      %535 = vperm.xlu0 %534, %v530
      %v536 = vpop.permute.xlu0 %535
      %v537 = vperm.slane %v508, 4
      %v538 = vlaneseq
      %v539 = vshrl.u32 %v538, 7
      %541 = vset.pattern.permute.xlu0 %v539
      %542 = vperm.xlu0 %541, %v537
      %v543 = vpop.permute.xlu0 %542
      %v544 = vperm.slane %v508, 5
      %v545 = vlaneseq
      %v546 = vshrl.u32 %v545, 7
      %548 = vset.pattern.permute.xlu0 %v546
      %549 = vperm.xlu0 %548, %v544
      %v550 = vpop.permute.xlu0 %549
      %v551 = vperm.slane %v508, 6
      %v552 = vlaneseq
      %v553 = vshrl.u32 %v552, 7
      %555 = vset.pattern.permute.xlu0 %v553
      %556 = vperm.xlu0 %555, %v551
      %v557 = vpop.permute.xlu0 %556
      %v558 = vperm.slane %v508, 7
      %v559 = vlaneseq
      %v560 = vshrl.u32 %v559, 7
      %562 = vset.pattern.permute.xlu0 %v560
      %563 = vperm.xlu0 %562, %v558
      %v564 = vpop.permute.xlu0 %563
      %v565 = vld [vmem:[%s17] sm:$0x1]
      %v567 = vperm.slane %v565, 0
      %v569 = vmul.f32 %v515, %v567
      %v570 = vmul.f32 %v522, %v567
      %v571 = vmul.f32 %v529, %v567
      %v572 = vmul.f32 %v536, %v567
      %v573 = vmul.f32 %v543, %v567
      %v574 = vmul.f32 %v550, %v567
      %v575 = vmul.f32 %v557, %v567
      %v576 = vmul.f32 %v564, %v567
      %v577 = vld [vmem:[#allocation14] sm:$0xff]
      %v578 = vld [vmem:[#allocation14 + $0x8] sm:$0xff]
      %v579 = vld [vmem:[#allocation14 + $0x10] sm:$0xff]
      %v580 = vld [vmem:[#allocation14 + $0x18] sm:$0xff]
      %v581 = vld [vmem:[#allocation14 + $0x20] sm:$0xff]
      %v582 = vld [vmem:[#allocation14 + $0x28] sm:$0xff]
      %v583 = vld [vmem:[#allocation14 + $0x30] sm:$0xff]
      %v584 = vld [vmem:[#allocation14 + $0x38] sm:$0xff]
      %v586 = vrot.slane %v505, 1
      %v587 = vrot.slane %v505, 2
      %v588 = vrot.slane %v505, 3
      %v589 = vrot.slane %v505, 4
      %v590 = vrot.slane %v505, 5
      %v591 = vrot.slane %v505, 6
      %v592 = vrot.slane %v505, 7
      %v593 = vperm.slane %v505, 0
      %v594 = vperm.slane %v586, 0
      %v595 = vperm.slane %v587, 0
      %v596 = vperm.slane %v588, 0
      %v597 = vperm.slane %v589, 0
      %v598 = vperm.slane %v590, 0
      %v599 = vperm.slane %v591, 0
      %v600 = vperm.slane %v592, 0
      %v609 = vadd.f32 %v577, %v593
      %v610 = vadd.f32 %v578, %v594
      %v611 = vadd.f32 %v579, %v595
      %v612 = vadd.f32 %v580, %v596
      %v613 = vadd.f32 %v581, %v597
      %v614 = vadd.f32 %v582, %v598
      %v615 = vadd.f32 %v583, %v599
      %v616 = vadd.f32 %v584, %v600
      %v617 = vadd.f32 %v609, %v569
      %v618 = vadd.f32 %v610, %v570
      %v619 = vadd.f32 %v611, %v571
      %v620 = vadd.f32 %v612, %v572
      %v621 = vadd.f32 %v613, %v573
      %v622 = vadd.f32 %v614, %v574
      %v623 = vadd.f32 %v615, %v575
      %v624 = vadd.f32 %v616, %v576
      %v625 = vtanh.pop %v617
      %v626 = vtanh.pop %v618
      %v627 = vtanh.pop %v619
      %v628 = vtanh.pop %v620
      %v629 = vtanh.pop %v621
      %v630 = vtanh.pop %v622
      %v631 = vtanh.pop %v623
      %v632 = vtanh.pop %v624
      %v633 = vld [vmem:[%s15] sm:$0x1]
      %v635 = vperm.slane %v633, 0
      %v637 = vmul.f32 %v625, %v635
      %v638 = vmul.f32 %v626, %v635
      %v639 = vmul.f32 %v627, %v635
      %v640 = vmul.f32 %v628, %v635
      %v641 = vmul.f32 %v629, %v635
      %v642 = vmul.f32 %v630, %v635
      %v643 = vmul.f32 %v631, %v635
      %v644 = vmul.f32 %v632, %v635
      %v645 = vsel %vm345, %v637, 0.0
      %646 = vadd.xlane.f32.xlu0 %v645
      %v647 = vpop.xlane.xlu0 %646
      %v648 = vsel %vm345, %v638, 0.0
      %649 = vadd.xlane.f32.xlu0 %v648
      %v650 = vpop.xlane.xlu0 %649
      %v651 = vsel %vm345, %v639, 0.0
      %652 = vadd.xlane.f32.xlu0 %v651
      %v653 = vpop.xlane.xlu0 %652
      %v654 = vsel %vm345, %v640, 0.0
      %655 = vadd.xlane.f32.xlu0 %v654
      %v656 = vpop.xlane.xlu0 %655
      %v657 = vsel %vm345, %v641, 0.0
      %658 = vadd.xlane.f32.xlu0 %v657
      %v659 = vpop.xlane.xlu0 %658
      %v660 = vsel %vm345, %v642, 0.0
      %661 = vadd.xlane.f32.xlu0 %v660
      %v662 = vpop.xlane.xlu0 %661
      %v663 = vsel %vm345, %v643, 0.0
      %664 = vadd.xlane.f32.xlu0 %v663
      %v665 = vpop.xlane.xlu0 %664
      %v666 = vsel %vm345, %v644, 0.0
      %667 = vadd.xlane.f32.xlu0 %v666
      %v668 = vpop.xlane.xlu0 %667
      %v677 = vlaneseq
      %v678 = vand.u32 %v677, 127
      %v679 = vperm.slane %v647, %v678
      %v680 = vperm.slane %v650, %v678
      %v681 = vperm.slane %v653, %v678
      %v682 = vperm.slane %v656, %v678
      %v683 = vperm.slane %v659, %v678
      %v684 = vperm.slane %v662, %v678
      %v685 = vperm.slane %v665, %v678
      %v686 = vperm.slane %v668, %v678
      %vm687 = vcmask 1041409
      %v688 = vsel %vm687, %v680, %v679
      %vm689 = vcmask 1042434
      %v690 = vsel %vm689, %v681, %v688
      %vm691 = vcmask 1043459
      %v692 = vsel %vm691, %v682, %v690
      %vm693 = vcmask 1044484
      %v694 = vsel %vm693, %v683, %v692
      %vm695 = vcmask 1045509
      %v696 = vsel %vm695, %v684, %v694
      %vm697 = vcmask 1046534
      %v698 = vsel %vm697, %v685, %v696
      %vm699 = vcmask 1047559
      %v700 = vsel %vm699, %v686, %v698
      %vm702 = vcmask 64512
      %v703 = vsel %vm702, %v700, -inf
      %704 = vmax.xlane.f32.xlu0 %v703
      %v705 = vpop.xlane.xlu0 %704
      %v707 = vperm.slane %v705, 0
      %v708 = vperm.slane %v705, 1
      %v709 = vperm.slane %v705, 2
      %v710 = vperm.slane %v705, 3
      %v711 = vperm.slane %v705, 4
      %v712 = vperm.slane %v705, 5
      %v713 = vperm.slane %v705, 6
      %v714 = vperm.slane %v705, 7
      %v723 = vsub.f32 %v647, %v707
      %v724 = vsub.f32 %v650, %v708
      %v725 = vsub.f32 %v653, %v709
      %v726 = vsub.f32 %v656, %v710
      %v727 = vsub.f32 %v659, %v711
      %v728 = vsub.f32 %v662, %v712
      %v729 = vsub.f32 %v665, %v713
      %v730 = vsub.f32 %v668, %v714
      %v731 = vmul.f32 %v723, 1.442695
      %v732 = vpow.pop %v731
      %v733 = vmul.f32 %v724, 1.442695
      %v734 = vpow.pop %v733
      %v735 = vmul.f32 %v725, 1.442695
      %v736 = vpow.pop %v735
      %v737 = vmul.f32 %v726, 1.442695
      %v738 = vpow.pop %v737
      %v739 = vmul.f32 %v727, 1.442695
      %v740 = vpow.pop %v739
      %v741 = vmul.f32 %v728, 1.442695
      %v742 = vpow.pop %v741
      %v743 = vmul.f32 %v729, 1.442695
      %v744 = vpow.pop %v743
      %v745 = vmul.f32 %v730, 1.442695
      %v746 = vpow.pop %v745
      %755 = vset.pattern.permute.xlu0 0
      %756 = vperm.xlu0 %755, %v732
      %v757 = vpop.permute.xlu0 %756
      %758 = vset.pattern.permute.xlu0 0
      %759 = vperm.xlu0 %758, %v734
      %v760 = vpop.permute.xlu0 %759
      %761 = vset.pattern.permute.xlu0 0
      %762 = vperm.xlu0 %761, %v736
      %v763 = vpop.permute.xlu0 %762
      %764 = vset.pattern.permute.xlu0 0
      %765 = vperm.xlu0 %764, %v738
      %v766 = vpop.permute.xlu0 %765
      %767 = vset.pattern.permute.xlu0 0
      %768 = vperm.xlu0 %767, %v740
      %v769 = vpop.permute.xlu0 %768
      %770 = vset.pattern.permute.xlu0 0
      %771 = vperm.xlu0 %770, %v742
      %v772 = vpop.permute.xlu0 %771
      %773 = vset.pattern.permute.xlu0 0
      %774 = vperm.xlu0 %773, %v744
      %v775 = vpop.permute.xlu0 %774
      %776 = vset.pattern.permute.xlu0 0
      %777 = vperm.xlu0 %776, %v746
      %v778 = vpop.permute.xlu0 %777
      %v779 = vperm.slane %v757, %v678
      %v780 = vperm.slane %v760, %v678
      %v781 = vperm.slane %v763, %v678
      %v782 = vperm.slane %v766, %v678
      %v783 = vperm.slane %v769, %v678
      %v784 = vperm.slane %v772, %v678
      %v785 = vperm.slane %v775, %v678
      %v786 = vperm.slane %v778, %v678
      %v787 = vsel %vm687, %v780, %v779
      %v788 = vsel %vm689, %v781, %v787
      %v789 = vsel %vm691, %v782, %v788
      %v790 = vsel %vm693, %v783, %v789
      %v791 = vsel %vm695, %v784, %v790
      %v792 = vsel %vm697, %v785, %v791
      %v793 = vsel %vm699, %v786, %v792
      %v795 = vsel %vm702, %v793, 0.0
      %796 = vadd.xlane.f32.xlu0 %v795
      %v797 = vpop.xlane.xlu0 %796
      %v798 = vrcp.pop %v797
      %v800 = vperm.slane %v798, 0
      %v801 = vperm.slane %v798, 1
      %v802 = vperm.slane %v798, 2
      %v803 = vperm.slane %v798, 3
      %v804 = vperm.slane %v798, 4
      %v805 = vperm.slane %v798, 5
      %v806 = vperm.slane %v798, 6
      %v807 = vperm.slane %v798, 7
      %v816 = vmul.f32 %v732, %v800
      %v817 = vmul.f32 %v734, %v801
      %v818 = vmul.f32 %v736, %v802
      %v819 = vmul.f32 %v738, %v803
      %v820 = vmul.f32 %v740, %v804
      %v821 = vmul.f32 %v742, %v805
      %v822 = vmul.f32 %v744, %v806
      %v823 = vmul.f32 %v746, %v807
      %v824 = vld [vmem:[#allocation12] sm:$0xf]
      %v825 = vld [vmem:[#allocation12 + $0x4] sm:$0xf]
      %v826 = vld [vmem:[#allocation12 + $0x8] sm:$0xf]
      %v827 = vld [vmem:[#allocation12 + $0xc] sm:$0xf]
      %v828 = vld [vmem:[#allocation12 + $0x10] sm:$0xf]
      %v829 = vld [vmem:[#allocation12 + $0x14] sm:$0xf]
      %v830 = vld [vmem:[#allocation12 + $0x18] sm:$0xf]
      %v831 = vld [vmem:[#allocation12 + $0x1c] sm:$0xf]
      %v832 = vunpack.c.l.bf16 %v824
      %v833 = vunpack.c.l.bf16 %v825
      %v834 = vunpack.c.l.bf16 %v826
      %v835 = vunpack.c.l.bf16 %v827
      %v836 = vunpack.c.l.bf16 %v828
      %v837 = vunpack.c.l.bf16 %v829
      %v838 = vunpack.c.l.bf16 %v830
      %v839 = vunpack.c.l.bf16 %v831
      %841 = vset.pattern.permute.xlu0 0
      %842 = vperm.xlu0 %841, %v816
      %v843 = vpop.permute.xlu0 %842
      %846 = vset.pattern.permute.xlu0 0
      %847 = vperm.xlu0 %846, %v817
      %v848 = vpop.permute.xlu0 %847
      %851 = vset.pattern.permute.xlu0 0
      %852 = vperm.xlu0 %851, %v818
      %v853 = vpop.permute.xlu0 %852
      %856 = vset.pattern.permute.xlu0 0
      %857 = vperm.xlu0 %856, %v819
      %v858 = vpop.permute.xlu0 %857
      %861 = vset.pattern.permute.xlu0 0
      %862 = vperm.xlu0 %861, %v820
      %v863 = vpop.permute.xlu0 %862
      %866 = vset.pattern.permute.xlu0 0
      %867 = vperm.xlu0 %866, %v821
      %v868 = vpop.permute.xlu0 %867
      %871 = vset.pattern.permute.xlu0 0
      %872 = vperm.xlu0 %871, %v822
      %v873 = vpop.permute.xlu0 %872
      %876 = vset.pattern.permute.xlu0 0
      %877 = vperm.xlu0 %876, %v823
      %v878 = vpop.permute.xlu0 %877
      %v880 = vmul.f32 %v843, %v832
      %v881 = vmul.f32 %v848, %v833
      %v882 = vmul.f32 %v853, %v834
      %v883 = vmul.f32 %v858, %v835
      %v884 = vmul.f32 %v863, %v836
      %v885 = vmul.f32 %v868, %v837
      %v886 = vmul.f32 %v873, %v838
      %v887 = vmul.f32 %v878, %v839
      %v888 = vsel %vm345, %v880, 0.0
      %v889 = vrot.slane %v888, 4
      %v890 = vadd.f32 %v888, %v889
      %v891 = vrot.slane %v890, 2
      %v892 = vadd.f32 %v890, %v891
      %v893 = vrot.slane %v892, 1
      %v894 = vadd.f32 %v892, %v893
      %v895 = vsel %vm345, %v881, 0.0
      %v896 = vrot.slane %v895, 4
      %v897 = vadd.f32 %v895, %v896
      %v898 = vrot.slane %v897, 2
      %v899 = vadd.f32 %v897, %v898
      %v900 = vrot.slane %v899, 1
      %v901 = vadd.f32 %v899, %v900
      %v902 = vsel %vm345, %v882, 0.0
      %v903 = vrot.slane %v902, 4
      %v904 = vadd.f32 %v902, %v903
      %v905 = vrot.slane %v904, 2
      %v906 = vadd.f32 %v904, %v905
      %v907 = vrot.slane %v906, 1
      %v908 = vadd.f32 %v906, %v907
      %v909 = vsel %vm345, %v883, 0.0
      %v910 = vrot.slane %v909, 4
      %v911 = vadd.f32 %v909, %v910
      %v912 = vrot.slane %v911, 2
      %v913 = vadd.f32 %v911, %v912
      %v914 = vrot.slane %v913, 1
      %v915 = vadd.f32 %v913, %v914
      %v916 = vsel %vm345, %v884, 0.0
      %v917 = vrot.slane %v916, 4
      %v918 = vadd.f32 %v916, %v917
      %v919 = vrot.slane %v918, 2
      %v920 = vadd.f32 %v918, %v919
      %v921 = vrot.slane %v920, 1
      %v922 = vadd.f32 %v920, %v921
      %v923 = vsel %vm345, %v885, 0.0
      %v924 = vrot.slane %v923, 4
      %v925 = vadd.f32 %v923, %v924
      %v926 = vrot.slane %v925, 2
      %v927 = vadd.f32 %v925, %v926
      %v928 = vrot.slane %v927, 1
      %v929 = vadd.f32 %v927, %v928
      %v930 = vsel %vm345, %v886, 0.0
      %v931 = vrot.slane %v930, 4
      %v932 = vadd.f32 %v930, %v931
      %v933 = vrot.slane %v932, 2
      %v934 = vadd.f32 %v932, %v933
      %v935 = vrot.slane %v934, 1
      %v936 = vadd.f32 %v934, %v935
      %v937 = vsel %vm345, %v887, 0.0
      %v938 = vrot.slane %v937, 4
      %v939 = vadd.f32 %v937, %v938
      %v940 = vrot.slane %v939, 2
      %v941 = vadd.f32 %v939, %v940
      %v942 = vrot.slane %v941, 1
      %v943 = vadd.f32 %v941, %v942
      %v944 = vld [vmem:[#allocation17] sm:$0xf]
      %v945 = vld [vmem:[#allocation17 + $0x4] sm:$0xf]
      %v946 = vld [vmem:[#allocation17 + $0x8] sm:$0xf]
      %v947 = vld [vmem:[#allocation17 + $0xc] sm:$0xf]
      %v948 = vld [vmem:[#allocation17 + $0x10] sm:$0xf]
      %v949 = vld [vmem:[#allocation17 + $0x14] sm:$0xf]
      %v950 = vld [vmem:[#allocation17 + $0x18] sm:$0xf]
      %v951 = vld [vmem:[#allocation17 + $0x1c] sm:$0xf]
      %952 = vrot.lane.b32.xlu0 %v593, 96
      %v953 = vpop.permute.xlu0 %952
      %954 = vrot.lane.b32.xlu0 %v594, 96
      %v955 = vpop.permute.xlu0 %954
      %956 = vrot.lane.b32.xlu0 %v595, 96
      %v957 = vpop.permute.xlu0 %956
      %958 = vrot.lane.b32.xlu0 %v596, 96
      %v959 = vpop.permute.xlu0 %958
      %960 = vrot.lane.b32.xlu0 %v597, 96
      %v961 = vpop.permute.xlu0 %960
      %962 = vrot.lane.b32.xlu0 %v598, 96
      %v963 = vpop.permute.xlu0 %962
      %964 = vrot.lane.b32.xlu0 %v599, 96
      %v965 = vpop.permute.xlu0 %964
      %966 = vrot.lane.b32.xlu0 %v600, 96
      %v967 = vpop.permute.xlu0 %966
      %v976 = vadd.f32 %v944, %v953
      %v977 = vadd.f32 %v945, %v955
      %v978 = vadd.f32 %v946, %v957
      %v979 = vadd.f32 %v947, %v959
      %v980 = vadd.f32 %v948, %v961
      %v981 = vadd.f32 %v949, %v963
      %v982 = vadd.f32 %v950, %v965
      %v983 = vadd.f32 %v951, %v967
      %v984 = vtanh.pop %v976
      %v985 = vtanh.pop %v977
      %v986 = vtanh.pop %v978
      %v987 = vtanh.pop %v979
      %v988 = vtanh.pop %v980
      %v989 = vtanh.pop %v981
      %v990 = vtanh.pop %v982
      %v991 = vtanh.pop %v983
      %v992 = vld [vmem:[%s16] sm:$0x1]
      %v994 = vperm.slane %v992, 0
      %v996 = vmul.f32 %v984, %v994
      %v997 = vmul.f32 %v985, %v994
      %v998 = vmul.f32 %v986, %v994
      %v999 = vmul.f32 %v987, %v994
      %v1000 = vmul.f32 %v988, %v994
      %v1001 = vmul.f32 %v989, %v994
      %v1002 = vmul.f32 %v990, %v994
      %v1003 = vmul.f32 %v991, %v994
      %vm1004 = vcmask 257024
      %v1005 = vsel %vm1004, %v996, 0.0
      %1006 = vadd.xlane.f32.xlu0 %v1005
      %v1007 = vpop.xlane.xlu0 %1006
      %v1008 = vsel %vm1004, %v997, 0.0
      %1009 = vadd.xlane.f32.xlu0 %v1008
      %v1010 = vpop.xlane.xlu0 %1009
      %v1011 = vsel %vm1004, %v998, 0.0
      %1012 = vadd.xlane.f32.xlu0 %v1011
      %v1013 = vpop.xlane.xlu0 %1012
      %v1014 = vsel %vm1004, %v999, 0.0
      %1015 = vadd.xlane.f32.xlu0 %v1014
      %v1016 = vpop.xlane.xlu0 %1015
      %v1017 = vsel %vm1004, %v1000, 0.0
      %1018 = vadd.xlane.f32.xlu0 %v1017
      %v1019 = vpop.xlane.xlu0 %1018
      %v1020 = vsel %vm1004, %v1001, 0.0
      %1021 = vadd.xlane.f32.xlu0 %v1020
      %v1022 = vpop.xlane.xlu0 %1021
      %v1023 = vsel %vm1004, %v1002, 0.0
      %1024 = vadd.xlane.f32.xlu0 %v1023
      %v1025 = vpop.xlane.xlu0 %1024
      %v1026 = vsel %vm1004, %v1003, 0.0
      %1027 = vadd.xlane.f32.xlu0 %v1026
      %v1028 = vpop.xlane.xlu0 %1027
      %v1037 = vperm.slane %v1007, %v678
      %v1038 = vperm.slane %v1010, %v678
      %v1039 = vperm.slane %v1013, %v678
      %v1040 = vperm.slane %v1016, %v678
      %v1041 = vperm.slane %v1019, %v678
      %v1042 = vperm.slane %v1022, %v678
      %v1043 = vperm.slane %v1025, %v678
      %v1044 = vperm.slane %v1028, %v678
      %v1045 = vsel %vm687, %v1038, %v1037
      %v1046 = vsel %vm689, %v1039, %v1045
      %v1047 = vsel %vm691, %v1040, %v1046
      %v1048 = vsel %vm693, %v1041, %v1047
      %v1049 = vsel %vm695, %v1042, %v1048
      %v1050 = vsel %vm697, %v1043, %v1049
      %v1051 = vsel %vm699, %v1044, %v1050
      %vm1053 = vcmask 31744
      %v1054 = vsel %vm1053, %v1051, -inf
      %1055 = vmax.xlane.f32.xlu0 %v1054
      %v1056 = vpop.xlane.xlu0 %1055
      %v1058 = vperm.slane %v1056, 0
      %v1059 = vperm.slane %v1056, 1
      %v1060 = vperm.slane %v1056, 2
      %v1061 = vperm.slane %v1056, 3
      %v1062 = vperm.slane %v1056, 4
      %v1063 = vperm.slane %v1056, 5
      %v1064 = vperm.slane %v1056, 6
      %v1065 = vperm.slane %v1056, 7
      %v1074 = vsub.f32 %v1007, %v1058
      %v1075 = vsub.f32 %v1010, %v1059
      %v1076 = vsub.f32 %v1013, %v1060
      %v1077 = vsub.f32 %v1016, %v1061
      %v1078 = vsub.f32 %v1019, %v1062
      %v1079 = vsub.f32 %v1022, %v1063
      %v1080 = vsub.f32 %v1025, %v1064
      %v1081 = vsub.f32 %v1028, %v1065
      %v1082 = vmul.f32 %v1074, 1.442695
      %v1083 = vpow.pop %v1082
      %v1084 = vmul.f32 %v1075, 1.442695
      %v1085 = vpow.pop %v1084
      %v1086 = vmul.f32 %v1076, 1.442695
      %v1087 = vpow.pop %v1086
      %v1088 = vmul.f32 %v1077, 1.442695
      %v1089 = vpow.pop %v1088
      %v1090 = vmul.f32 %v1078, 1.442695
      %v1091 = vpow.pop %v1090
      %v1092 = vmul.f32 %v1079, 1.442695
      %v1093 = vpow.pop %v1092
      %v1094 = vmul.f32 %v1080, 1.442695
      %v1095 = vpow.pop %v1094
      %v1096 = vmul.f32 %v1081, 1.442695
      %v1097 = vpow.pop %v1096
      %1106 = vset.pattern.permute.xlu0 0
      %1107 = vperm.xlu0 %1106, %v1083
      %v1108 = vpop.permute.xlu0 %1107
      %1109 = vset.pattern.permute.xlu0 0
      %1110 = vperm.xlu0 %1109, %v1085
      %v1111 = vpop.permute.xlu0 %1110
      %1112 = vset.pattern.permute.xlu0 0
      %1113 = vperm.xlu0 %1112, %v1087
      %v1114 = vpop.permute.xlu0 %1113
      %1115 = vset.pattern.permute.xlu0 0
      %1116 = vperm.xlu0 %1115, %v1089
      %v1117 = vpop.permute.xlu0 %1116
      %1118 = vset.pattern.permute.xlu0 0
      %1119 = vperm.xlu0 %1118, %v1091
      %v1120 = vpop.permute.xlu0 %1119
      %1121 = vset.pattern.permute.xlu0 0
      %1122 = vperm.xlu0 %1121, %v1093
      %v1123 = vpop.permute.xlu0 %1122
      %1124 = vset.pattern.permute.xlu0 0
      %1125 = vperm.xlu0 %1124, %v1095
      %v1126 = vpop.permute.xlu0 %1125
      %1127 = vset.pattern.permute.xlu0 0
      %1128 = vperm.xlu0 %1127, %v1097
      %v1129 = vpop.permute.xlu0 %1128
      %v1130 = vperm.slane %v1108, %v678
      %v1131 = vperm.slane %v1111, %v678
      %v1132 = vperm.slane %v1114, %v678
      %v1133 = vperm.slane %v1117, %v678
      %v1134 = vperm.slane %v1120, %v678
      %v1135 = vperm.slane %v1123, %v678
      %v1136 = vperm.slane %v1126, %v678
      %v1137 = vperm.slane %v1129, %v678
      %v1138 = vsel %vm687, %v1131, %v1130
      %v1139 = vsel %vm689, %v1132, %v1138
      %v1140 = vsel %vm691, %v1133, %v1139
      %v1141 = vsel %vm693, %v1134, %v1140
      %v1142 = vsel %vm695, %v1135, %v1141
      %v1143 = vsel %vm697, %v1136, %v1142
      %v1144 = vsel %vm699, %v1137, %v1143
      %v1146 = vsel %vm1053, %v1144, 0.0
      %1147 = vadd.xlane.f32.xlu0 %v1146
      %v1148 = vpop.xlane.xlu0 %1147
      %v1149 = vrcp.pop %v1148
      %v1151 = vperm.slane %v1149, 0
      %v1152 = vperm.slane %v1149, 1
      %v1153 = vperm.slane %v1149, 2
      %v1154 = vperm.slane %v1149, 3
      %v1155 = vperm.slane %v1149, 4
      %v1156 = vperm.slane %v1149, 5
      %v1157 = vperm.slane %v1149, 6
      %v1158 = vperm.slane %v1149, 7
      %v1167 = vmul.f32 %v1083, %v1151
      %v1168 = vmul.f32 %v1085, %v1152
      %v1169 = vmul.f32 %v1087, %v1153
      %v1170 = vmul.f32 %v1089, %v1154
      %v1171 = vmul.f32 %v1091, %v1155
      %v1172 = vmul.f32 %v1093, %v1156
      %v1173 = vmul.f32 %v1095, %v1157
      %v1174 = vmul.f32 %v1097, %v1158
      %v1175 = vld [vmem:[#allocation15] sm:$0x3]
      %v1176 = vld [vmem:[#allocation15 + $0x2] sm:$0x3]
      %v1177 = vld [vmem:[#allocation15 + $0x4] sm:$0x3]
      %v1178 = vld [vmem:[#allocation15 + $0x6] sm:$0x3]
      %v1179 = vld [vmem:[#allocation15 + $0x8] sm:$0x3]
      %v1180 = vld [vmem:[#allocation15 + $0xa] sm:$0x3]
      %v1181 = vld [vmem:[#allocation15 + $0xc] sm:$0x3]
      %v1182 = vld [vmem:[#allocation15 + $0xe] sm:$0x3]
      %v1183 = vunpack.c.l.bf16 %v1175
      %v1184 = vunpack.c.l.bf16 %v1176
      %v1185 = vunpack.c.l.bf16 %v1177
      %v1186 = vunpack.c.l.bf16 %v1178
      %v1187 = vunpack.c.l.bf16 %v1179
      %v1188 = vunpack.c.l.bf16 %v1180
      %v1189 = vunpack.c.l.bf16 %v1181
      %v1190 = vunpack.c.l.bf16 %v1182
      %1192 = vset.pattern.permute.xlu0 0
      %1193 = vperm.xlu0 %1192, %v1167
      %v1194 = vpop.permute.xlu0 %1193
      %1197 = vset.pattern.permute.xlu0 0
      %1198 = vperm.xlu0 %1197, %v1168
      %v1199 = vpop.permute.xlu0 %1198
      %1202 = vset.pattern.permute.xlu0 0
      %1203 = vperm.xlu0 %1202, %v1169
      %v1204 = vpop.permute.xlu0 %1203
      %1207 = vset.pattern.permute.xlu0 0
      %1208 = vperm.xlu0 %1207, %v1170
      %v1209 = vpop.permute.xlu0 %1208
      %1212 = vset.pattern.permute.xlu0 0
      %1213 = vperm.xlu0 %1212, %v1171
      %v1214 = vpop.permute.xlu0 %1213
      %1217 = vset.pattern.permute.xlu0 0
      %1218 = vperm.xlu0 %1217, %v1172
      %v1219 = vpop.permute.xlu0 %1218
      %1222 = vset.pattern.permute.xlu0 0
      %1223 = vperm.xlu0 %1222, %v1173
      %v1224 = vpop.permute.xlu0 %1223
      %1227 = vset.pattern.permute.xlu0 0
      %1228 = vperm.xlu0 %1227, %v1174
      %v1229 = vpop.permute.xlu0 %1228
      %v1231 = vmul.f32 %v1194, %v1183
      %v1232 = vmul.f32 %v1199, %v1184
      %v1233 = vmul.f32 %v1204, %v1185
      %v1234 = vmul.f32 %v1209, %v1186
      %v1235 = vmul.f32 %v1214, %v1187
      %v1236 = vmul.f32 %v1219, %v1188
      %v1237 = vmul.f32 %v1224, %v1189
      %v1238 = vmul.f32 %v1229, %v1190
      %v1239 = vsel %vm1004, %v1231, 0.0
      %v1240 = vrot.slane %v1239, 4
      %v1241 = vadd.f32 %v1239, %v1240
      %v1242 = vrot.slane %v1241, 2
      %v1243 = vadd.f32 %v1241, %v1242
      %v1244 = vrot.slane %v1243, 1
      %v1245 = vadd.f32 %v1243, %v1244
      %v1246 = vsel %vm1004, %v1232, 0.0
      %v1247 = vrot.slane %v1246, 4
      %v1248 = vadd.f32 %v1246, %v1247
      %v1249 = vrot.slane %v1248, 2
      %v1250 = vadd.f32 %v1248, %v1249
      %v1251 = vrot.slane %v1250, 1
      %v1252 = vadd.f32 %v1250, %v1251
      %v1253 = vsel %vm1004, %v1233, 0.0
      %v1254 = vrot.slane %v1253, 4
      %v1255 = vadd.f32 %v1253, %v1254
      %v1256 = vrot.slane %v1255, 2
      %v1257 = vadd.f32 %v1255, %v1256
      %v1258 = vrot.slane %v1257, 1
      %v1259 = vadd.f32 %v1257, %v1258
      %v1260 = vsel %vm1004, %v1234, 0.0
      %v1261 = vrot.slane %v1260, 4
      %v1262 = vadd.f32 %v1260, %v1261
      %v1263 = vrot.slane %v1262, 2
      %v1264 = vadd.f32 %v1262, %v1263
      %v1265 = vrot.slane %v1264, 1
      %v1266 = vadd.f32 %v1264, %v1265
      %v1267 = vsel %vm1004, %v1235, 0.0
      %v1268 = vrot.slane %v1267, 4
      %v1269 = vadd.f32 %v1267, %v1268
      %v1270 = vrot.slane %v1269, 2
      %v1271 = vadd.f32 %v1269, %v1270
      %v1272 = vrot.slane %v1271, 1
      %v1273 = vadd.f32 %v1271, %v1272
      %v1274 = vsel %vm1004, %v1236, 0.0
      %v1275 = vrot.slane %v1274, 4
      %v1276 = vadd.f32 %v1274, %v1275
      %v1277 = vrot.slane %v1276, 2
      %v1278 = vadd.f32 %v1276, %v1277
      %v1279 = vrot.slane %v1278, 1
      %v1280 = vadd.f32 %v1278, %v1279
      %v1281 = vsel %vm1004, %v1237, 0.0
      %v1282 = vrot.slane %v1281, 4
      %v1283 = vadd.f32 %v1281, %v1282
      %v1284 = vrot.slane %v1283, 2
      %v1285 = vadd.f32 %v1283, %v1284
      %v1286 = vrot.slane %v1285, 1
      %v1287 = vadd.f32 %v1285, %v1286
      %v1288 = vsel %vm1004, %v1238, 0.0
      %v1289 = vrot.slane %v1288, 4
      %v1290 = vadd.f32 %v1288, %v1289
      %v1291 = vrot.slane %v1290, 2
      %v1292 = vadd.f32 %v1290, %v1291
      %v1293 = vrot.slane %v1292, 1
      %v1294 = vadd.f32 %v1292, %v1293
      %v1295 = vld [vmem:[%s19] sm:$0xf]
      %v1296 = vperm.slane %v1295, 0
      %1298 = vrot.lane.b32.xlu0 %v1296, 96
      %v1299 = vpop.permute.xlu0 %1298
      %v1301 = vmul.f32 %v433, %v1299
      %v1302 = vperm.slane %v1295, 1
      %1304 = vrot.lane.b32.xlu0 %v1302, 32
      %v1305 = vpop.permute.xlu0 %1304
      %v1307 = vmul.f32 %v427, %v1305
      %1309 = vrot.lane.b32.xlu0 %v1307, 64
      %v1310 = vpop.permute.xlu0 %1309
      %v1312 = vadd.f32 %v1301, %v1310
      %v1313 = vperm.slane %v1295, 2
      %v1314 = vmul.f32 %v894, %v1313
      %v1315 = vmul.f32 %v901, %v1313
      %v1316 = vmul.f32 %v908, %v1313
      %v1317 = vmul.f32 %v915, %v1313
      %v1318 = vmul.f32 %v922, %v1313
      %v1319 = vmul.f32 %v929, %v1313
      %v1320 = vmul.f32 %v936, %v1313
      %v1321 = vmul.f32 %v943, %v1313
      %v1330 = vrot.slane %v1315, 7
      %v1331 = vsel %vm687, %v1330, %v1314
      %v1332 = vrot.slane %v1316, 6
      %v1333 = vsel %vm689, %v1332, %v1331
      %v1334 = vrot.slane %v1317, 5
      %v1335 = vsel %vm691, %v1334, %v1333
      %v1336 = vrot.slane %v1318, 4
      %v1337 = vsel %vm693, %v1336, %v1335
      %v1338 = vrot.slane %v1319, 3
      %v1339 = vsel %vm695, %v1338, %v1337
      %v1340 = vrot.slane %v1320, 2
      %v1341 = vsel %vm697, %v1340, %v1339
      %v1342 = vrot.slane %v1321, 1
      %v1343 = vsel %vm699, %v1342, %v1341
      %1344 = vrot.lane.b32.xlu0 %v1343, 96
      %v1345 = vpop.permute.xlu0 %1344
      %v1347 = vadd.f32 %v1312, %v1345
      %v1348 = vperm.slane %v1295, 3
      %v1349 = vmul.f32 %v1245, %v1348
      %v1350 = vmul.f32 %v1252, %v1348
      %v1351 = vmul.f32 %v1259, %v1348
      %v1352 = vmul.f32 %v1266, %v1348
      %v1353 = vmul.f32 %v1273, %v1348
      %v1354 = vmul.f32 %v1280, %v1348
      %v1355 = vmul.f32 %v1287, %v1348
      %v1356 = vmul.f32 %v1294, %v1348
      %v1365 = vrot.slane %v1350, 7
      %v1366 = vsel %vm687, %v1365, %v1349
      %v1367 = vrot.slane %v1351, 6
      %v1368 = vsel %vm689, %v1367, %v1366
      %v1369 = vrot.slane %v1352, 5
      %v1370 = vsel %vm691, %v1369, %v1368
      %v1371 = vrot.slane %v1353, 4
      %v1372 = vsel %vm693, %v1371, %v1370
      %v1373 = vrot.slane %v1354, 3
      %v1374 = vsel %vm695, %v1373, %v1372
      %v1375 = vrot.slane %v1355, 2
      %v1376 = vsel %vm697, %v1375, %v1374
      %v1377 = vrot.slane %v1356, 1
      %v1378 = vsel %vm699, %v1377, %v1376
      %1379 = vrot.lane.b32.xlu0 %v1378, 96
      %v1380 = vpop.permute.xlu0 %1379
      %v1382 = vadd.f32 %v1347, %v1380
      %v1383 = vld [vmem:[%s18] sm:$0x1]
      %v1385 = vperm.slane %v1383, 0
      %v1387 = vmul.f32 %v292, %v1385
      %v1388 = vsel %vm308, %v1387, 0.0
      %1389 = vadd.xlane.f32.xlu0 %v1388
      %v1390 = vpop.xlane.xlu0 %1389
      %1392 = vrot.lane.b32.xlu0 %v1382, 32
      %v1393 = vpop.permute.xlu0 %1392
      %v1395 = vsel %vm345, %v1393, 0.0
      %1396 = vadd.xlane.f32.xlu0 %v1395
      %v1397 = vpop.xlane.xlu0 %1396
      %v1398 = vadd.f32 %v1390, %v1397
      %v1399 = vld [vmem:[#allocation5] sm:$0x1]
      %v1401 = vperm.slane %v1399, 0
      %v1403 = vadd.f32 %v1398, %v1401
      %v1404 = vand.u32 2147483647, %v1403
      %v1405 = vsub.f32 0.0, %v1404
      %v1406 = vmul.f32 %v1405, 1.442695
      %v1407 = vpow.pop %v1406
      %vm1408 = vcmp.ge.f32.partialorder %v1403, 0.0
      %v1409 = vadd.f32 %v1407, 1.0
      %v1410 = vrcp.pop %v1409
      %v1411 = vmul.f32 %v1409, %v1410
      %v1412 = vsub.f32 1.0, %v1411
      %v1413 = vmul.f32 %v1410, %v1412
      %v1414 = vadd.f32 %v1410, %v1413
      %vm1415 = vweird.f32 %v1409
      %vm1416 = vweird.f32 %v1410
      %vm1417 = vmor %vm1415, %vm1416
      %v1418 = vsel %vm1417, %v1410, %v1414
      %v1419 = vand.u32 2147483647, %v1409
      %vm1420 = vcmp.eq.f32.partialorder %v1419, 8.507059e+37
      %v1421 = vand.u32 %v1409, 2147483648
      %v1422 = vor.u32 1.1754944e-38, %v1421
      %v1423 = vsel %vm1420, %v1422, %v1418
      %v1424 = vmul.f32 1.0, %v1423
      %v1425 = vmul.f32 %v1407, %v1423
      %v1426 = vsel %vm1408, %v1424, %v1425
      %1427 = vrot.lane.b32.xlu0 %v438, 32
      %v1428 = vpop.permute.xlu0 %1427
      %1430 = vst.msk [vmem:[#allocation2] sm:$0xf] %vm1004, %v1428
      %v1431 = vpack.c.bf16 %v894, %v894
      %v1432 = vpack.c.bf16 %v901, %v901
      %v1433 = vpack.c.bf16 %v908, %v908
      %v1434 = vpack.c.bf16 %v915, %v915
      %v1435 = vpack.c.bf16 %v922, %v922
      %v1436 = vpack.c.bf16 %v929, %v929
      %v1437 = vpack.c.bf16 %v936, %v936
      %v1438 = vpack.c.bf16 %v943, %v943
      %v1447 = vunpack.c.l.b16 %v1431
      %v1448 = vunpack.c.l.b16 %v1432
      %v1449 = vunpack.c.l.b16 %v1433
      %v1450 = vunpack.c.l.b16 %v1434
      %v1451 = vunpack.c.l.b16 %v1435
      %v1452 = vunpack.c.l.b16 %v1436
      %v1453 = vunpack.c.l.b16 %v1437
      %v1454 = vunpack.c.l.b16 %v1438
      %v1455 = vsel %vm687, %v1448, %v1447
      %v1456 = vsel %vm689, %v1449, %v1455
      %v1457 = vsel %vm691, %v1450, %v1456
      %v1458 = vsel %vm693, %v1451, %v1457
      %v1459 = vsel %vm695, %v1452, %v1458
      %v1460 = vsel %vm697, %v1453, %v1459
      %v1461 = vsel %vm699, %v1454, %v1460
      %v1462 = vpack.c.b16 %v1461, %v1461
      %1463 = vrot.lane.b32.xlu0 %v1462, 32
      %v1464 = vpop.permute.xlu0 %1463
      %vm1466 = vcmask 519424
      %1467 = vst.msk [vmem:[#allocation2] sm:$0xf] %vm1466, %v1464
      %v1468 = vpack.c.bf16 %v1245, %v1245
      %v1469 = vpack.c.bf16 %v1252, %v1252
      %v1470 = vpack.c.bf16 %v1259, %v1259
      %v1471 = vpack.c.bf16 %v1266, %v1266
      %v1472 = vpack.c.bf16 %v1273, %v1273
      %v1473 = vpack.c.bf16 %v1280, %v1280
      %v1474 = vpack.c.bf16 %v1287, %v1287
      %v1475 = vpack.c.bf16 %v1294, %v1294
      %v1484 = vunpack.c.l.b16 %v1468
      %v1485 = vunpack.c.l.b16 %v1469
      %v1486 = vunpack.c.l.b16 %v1470
      %v1487 = vunpack.c.l.b16 %v1471
      %v1488 = vunpack.c.l.b16 %v1472
      %v1489 = vunpack.c.l.b16 %v1473
      %v1490 = vunpack.c.l.b16 %v1474
      %v1491 = vunpack.c.l.b16 %v1475
      %v1492 = vsel %vm687, %v1485, %v1484
      %v1493 = vsel %vm689, %v1486, %v1492
      %v1494 = vsel %vm691, %v1487, %v1493
      %v1495 = vsel %vm693, %v1488, %v1494
      %v1496 = vsel %vm695, %v1489, %v1495
      %v1497 = vsel %vm697, %v1490, %v1496
      %v1498 = vsel %vm699, %v1491, %v1497
      %v1499 = vpack.c.b16 %v1498, %v1498
      %1500 = vrot.lane.b32.xlu0 %v1499, 64
      %v1501 = vpop.permute.xlu0 %1500
      %vm1503 = vcmask 781824
      %1504 = vst.msk [vmem:[#allocation2] sm:$0xf] %vm1503, %v1501
      %vm1505 = vcmask 7168
      %1506 = vst.msk [vmem:[#allocation3] sm:$0xff] %vm1505, -inf
      %1507 = vst.msk [vmem:[#allocation4] sm:$0xff] %vm1505, 0.0
      %1508 = vst [vmem:[#allocation30] sm:$0xff] 0.0
      %1510 = vrot.lane.b32.xlu0 %v433, 32
      %v1511 = vpop.permute.xlu0 %1510
      %1513 = vst.msk [vmem:[#allocation30] sm:$0xff] %vm345, %v1511
      %vm1514 = vcmask 523520
      %1515 = vst.msk [vmem:[#allocation30] sm:$0xff] %vm1514, %v427
      %v1524 = vsel %vm687, %v901, %v894
      %v1525 = vsel %vm689, %v908, %v1524
      %v1526 = vsel %vm691, %v915, %v1525
      %v1527 = vsel %vm693, %v922, %v1526
      %v1528 = vsel %vm695, %v929, %v1527
      %v1529 = vsel %vm697, %v936, %v1528
      %v1530 = vsel %vm699, %v943, %v1529
      %1531 = vrot.lane.b32.xlu0 %v1530, 64
      %v1532 = vpop.permute.xlu0 %1531
      %vm1534 = vcmask 785920
      %1535 = vst.msk [vmem:[#allocation30] sm:$0xff] %vm1534, %v1532
      %v1536 = vadd.s32 %v678, 4294967200
      %v1537 = vperm.slane %v843, %v1536
      %v1538 = vperm.slane %v848, %v1536
      %v1539 = vperm.slane %v853, %v1536
      %v1540 = vperm.slane %v858, %v1536
      %v1541 = vperm.slane %v863, %v1536
      %v1542 = vperm.slane %v868, %v1536
      %v1543 = vperm.slane %v873, %v1536
      %v1544 = vperm.slane %v878, %v1536
      %v1545 = vsel %vm687, %v1538, %v1537
      %v1546 = vsel %vm689, %v1539, %v1545
      %v1547 = vsel %vm691, %v1540, %v1546
      %v1548 = vsel %vm693, %v1541, %v1547
      %v1549 = vsel %vm695, %v1542, %v1548
      %v1550 = vsel %vm697, %v1543, %v1549
      %v1551 = vsel %vm699, %v1544, %v1550
      %vm1553 = vcmask 851712
      %1554 = vst.msk [vmem:[#allocation30] sm:$0xff] %vm1553, %v1551
      %1556 = vrot.lane.b32.xlu0 %v1426, 104
      %v1557 = vpop.permute.xlu0 %1556
      %vm1559 = vcmask 859968
      %1560 = vst.msk [vmem:[#allocation30] sm:$0xff] %vm1559, %v1557
    $region149: #{tpu_custom_call.1} parent=1 // pred_fallthru
      _
    %v1561 = vld [vmem:[#allocation2] sm:$0xf]
    %v1562 = vld [vmem:[#allocation27] sm:$0xf]
    %v1563 = vld [vmem:[#allocation27 + $0x4] sm:$0xf]
    %v1564 = vld [vmem:[#allocation27 + $0x8] sm:$0xf]
    %v1565 = vld [vmem:[#allocation27 + $0xc] sm:$0xf]
    %v1566 = vld [vmem:[#allocation27 + $0x10] sm:$0xf]
    %v1567 = vld [vmem:[#allocation27 + $0x14] sm:$0xf]
    %v1568 = vld [vmem:[#allocation27 + $0x18] sm:$0xf]
    %v1569 = vld [vmem:[#allocation27 + $0x1c] sm:$0xf]
    %v1570 = vld [vmem:[#allocation27 + $0x20] sm:$0xf]
    %v1571 = vld [vmem:[#allocation27 + $0x24] sm:$0xf]
    %v1572 = vld [vmem:[#allocation27 + $0x28] sm:$0xf]
    %v1573 = vld [vmem:[#allocation27 + $0x2c] sm:$0xf]
    %v1586 = vunpack.c.l.b16 %v1562
    %v1587 = vunpack.c.l.b16 %v1563
    %v1588 = vunpack.c.l.b16 %v1564
    %v1589 = vunpack.c.l.b16 %v1565
    %v1590 = vunpack.c.l.b16 %v1566
    %v1591 = vunpack.c.l.b16 %v1567
    %v1592 = vunpack.c.l.b16 %v1568
    %v1593 = vunpack.c.l.b16 %v1569
    %v1594 = vunpack.c.l.b16 %v1570
    %v1595 = vunpack.c.l.b16 %v1571
    %v1596 = vunpack.c.l.b16 %v1572
    %v1597 = vunpack.c.l.b16 %v1573
    %v1598 = vpack.c.b16 %v1587, %v1586
    %v1599 = vpack.c.b16 %v1589, %v1588
    %v1600 = vpack.c.b16 %v1591, %v1590
    %v1601 = vpack.c.b16 %v1593, %v1592
    %v1602 = vpack.c.b16 %v1595, %v1594
    %v1603 = vpack.c.b16 %v1597, %v1596
    %vm1610 = vcmask 785408
    %v1612 = vsel %vm1610, %v1561, 0
    %1614 = vmatpush.bf16.msra.mxu0 0
    %1615 = vmatpush.bf16.msra.mxu0 0
    %1616 = vmatpush.bf16.msra.mxu0 %v1603
    %1617 = vmatpush.bf16.msra.mxu0 %v1602
    %1618 = vmatpush.bf16.msra.mxu0 %v1601
    %1619 = vmatpush.bf16.msra.mxu0 %v1600
    %1620 = vmatpush.bf16.msra.mxu0 %v1599
    %1621 = vmatpush.bf16.msra.mxu0 %v1598
    %1622 = vmatmul.bf16.gmra.mxu0 %v1612
    %v1623 = vpop.f32.mrf.mxu0
    %v1624 = vadd.f32 0.0, %v1623
    %v1625 = vpop.f32.mrf.mxu0
    %1626 = vdwg.mxu0
    %v1627 = vlaneseq
    %v1628 = vand.u32 %v1627, 127
    %s1629 = smul.u32 0, 128
    %v1630 = vstv %s1629
    %v1631 = vadd.s32 %v1628, %v1630
    %vm1632 = vcmp.lt.s32.totalorder %v1631, 50
    %v1633 = vsel %vm1632, %v1624, -1e+30
    %1634 = vst [vmem:[#allocation29] sm:$0xff] %v1633
    %v1635 = vld [vmem:[#allocation3] sm:$0xff]
    %1636 = vmax.xlane.f32.xlu0 %v1633
    %v1637 = vpop.xlane.xlu0 %1636
    %v1638 = vmax.f32 %v1635, %v1637
    %v1639 = vld [vmem:[#allocation4] sm:$0xff]
    %v1640 = vsub.f32 %v1635, %v1638
    %v1641 = vmul.f32 %v1640, 1.442695
    %v1642 = vpow.pop %v1641
    %v1643 = vmul.f32 %v1639, %v1642
    %1645 = vset.pattern.permute.xlu0 0
    %1646 = vperm.xlu0 %1645, %v1638
    %v1647 = vpop.permute.xlu0 %1646
    %v1649 = vsub.f32 %v1633, %v1647
    %v1650 = vmul.f32 %v1649, 1.442695
    %v1651 = vpow.pop %v1650
    %1652 = vadd.xlane.f32.xlu0 %v1651
    %v1653 = vpop.xlane.xlu0 %1652
    %v1654 = vadd.f32 %v1643, %v1653
    %vm1655 = vcmask 7168
    %1656 = vst.msk [vmem:[#allocation4] sm:$0xff] %vm1655, %v1654
    %1657 = vst.msk [vmem:[#allocation3] sm:$0xff] %vm1655, %v1638
    // Predicated region
    $region150: #{tpu_custom_call.1} parent=1 // pred_check
      %p1658 = pneg %p288
    $region151: #{tpu_custom_call.1} parent=1 // pred_check_branch
      %1660 = sbr.rel (%p1658) target = $region153
    $region152: #{tpu_custom_call.1} parent=1 // pred_region
      %v1661 = vld [vmem:[#allocation3] sm:$0xff]
      %v1662 = vld [vmem:[#allocation4] sm:$0xff]
      %v1663 = vlog2.pop %v1662
      %v1664 = vmul.f32 %v1663, 0.6931472
      %v1665 = vadd.f32 %v1661, %v1664
      %1667 = vrot.lane.b32.xlu0 %v1665, 105
      %v1668 = vpop.permute.xlu0 %1667
      %vm1670 = vcmask 868168
      %1671 = vst.msk [vmem:[#allocation30] sm:$0xff] %vm1670, %v1668
    $region153: #{tpu_custom_call.1} parent=1 // pred_fallthru
      _
    // Predicated region
    $region154: #{tpu_custom_call.1} parent=1 // pred_check
      _
    $region155: #{tpu_custom_call.1} parent=1 // pred_check_branch
      %1673 = sbr.rel (0) target = $region157
    $region156: #{tpu_custom_call.1} parent=1 // pred_region
      %1675 = vsyncadd [#allocation8], 0
      %s1677 = sshll.u32 [#allocation29], 4
      %s1678 = int_to_ptr.vmem [resolvable:$true] %s1677
      %s1679 = sshll.u32 %s22, 4
      %s1680 = int_to_ptr.hbm [resolvable:$true] %s1679
      %1682 = dma.vmem_to_hbm [thread:$0]  %s1678, 128, %s1680, [#allocation8]
    $region157: #{tpu_custom_call.1} parent=1 // pred_fallthru
      _
    // Predicated region
    $region158: #{tpu_custom_call.1} parent=1 // pred_check
      _
    $region159: #{tpu_custom_call.1} parent=1 // pred_check_branch
      %1684 = sbr.rel (0) target = $region161
    $region160: #{tpu_custom_call.1} parent=1 // pred_region
      %1686 = vsyncadd [#allocation31], 0
      %s1688 = sshll.u32 [#allocation30], 4
      %s1689 = int_to_ptr.vmem [resolvable:$true] %s1688
      %s1690 = sshll.u32 %s23, 4
      %s1691 = int_to_ptr.hbm [resolvable:$true] %s1690
      %1693 = dma.vmem_to_hbm [thread:$0]  %s1689, 128, %s1691, [#allocation31]
    $region161: #{tpu_custom_call.1} parent=1 // pred_fallthru
      _
    // Predicated region
    $region162: #{tpu_custom_call.1} parent=1 // pred_check
      _
    $region163: #{tpu_custom_call.1} parent=1 // pred_check_branch
      %1695 = sbr.rel (0) target = $region165
    $region164: #{tpu_custom_call.1} parent=1 // pred_region
      %1697 = dma.done [#allocation8], 128
    $region165: #{tpu_custom_call.1} parent=1 // pred_fallthru
      _
    // Predicated region
    $region166: #{tpu_custom_call.1} parent=1 // pred_check
      _
    $region167: #{tpu_custom_call.1} parent=1 // pred_check_branch
      %1699 = sbr.rel (0) target = $region169
    $region168: #{tpu_custom_call.1} parent=1 // pred_region
      %1701 = dma.done [#allocation31], 128
    $region169: #{tpu_custom_call.1} parent=1 // pred_fallthru
      _
    %1702 = vsyncpa [#allocation7], 1
    %1703 = vsyncpa [#allocation10], 1
    %1704 = vsyncpa [#allocation13], 1
    %1705 = vsyncpa [#allocation16], 1
    %1706 = vsyncpa [#allocation19], 1
    %1707 = vsyncpa [#allocation22], 1
    %1708 = vsyncpa [#allocation25], 1
    %1709 = vsyncpa [#allocation28], 1
    %1710 = vsyncpa [#allocation8], 1
    %1711 = vsyncpa [#allocation31], 1

</llo_original>
